<compile_context>
chip_gen: v5e
topology: v5e:2x2
jax: 0.10.0
libtpu: 0.0.40
codegen_flags: <defaults>
</compile_context>

<pallas_src>
import jax
import jax.numpy as jnp
from jax.experimental import pallas as pl
from jax.experimental.pallas import tpu as pltpu


def _round_up(n, m):
    return ((n + m - 1) // m) * m


# ---------------------------------------------------------------------------
# In-kernel math helpers (values, not refs)
# ---------------------------------------------------------------------------
def _gelu(x):
    # tanh-approximate GELU: the tanh goes to the EUP (own VLIW slot), freeing the
    # VALU on the widest tensors (FFN hidden).  ~3e-4 max abs dev vs torch erf GELU.
    c = 0.7978845608028654  # sqrt(2/pi)
    return 0.5 * x * (1.0 + jnp.tanh(c * (x + 0.044715 * x * x * x)))


def _layernorm(x, g, b, eps=1e-5):
    mu = jnp.mean(x, axis=-1, keepdims=True)
    xc = x - mu
    var = jnp.mean(xc * xc, axis=-1, keepdims=True)
    return xc * jax.lax.rsqrt(var + eps) * g + b


# ---------------------------------------------------------------------------
# Fused per-layer kernel: DownScale + Snake1d + FocalBlock (+ optional final proj)
# ---------------------------------------------------------------------------
def make_layer_kernel(seq_len, dim, focal_level, ksizes, align_pad, ffn_chunk,
                      has_final_proj):
    def kernel(*refs):
        halo_ref = refs[-1]          # VMEM scratch (seq_len + 2*align_pad, dim) f32
        o_ref = refs[-2]
        x_ref = refs[0]
        it = iter(refs[1:-2])
        ds_w = next(it); ds_b = next(it); alpha = next(it); inv_alpha = next(it)
        ln1_g = next(it); ln1_b = next(it)
        in_w = next(it); in_b = next(it)
        dw = [(next(it), next(it)) for _ in range(focal_level)]
        ctx_w = next(it); ctx_b = next(it)
        om_w = next(it); om_b = next(it)
        ln2_g = next(it); ln2_b = next(it)
        f1_w = next(it); f1_b = next(it)
        f2_w = next(it); f2_b = next(it)
        if has_final_proj:
            po_w = next(it); po_b = next(it)

        # Zero ONLY the halo strips, and only once: they are never written by the
        # per-level context store below (which targets rows [align_pad, align_pad+S)),
        # and the scratch persists across the batch grid, so they stay zero =>
        # 'same' zero-padding for every batch element and every level.
        # NOTE(correctness invariant): if the conv write window ever changes, revisit.
        @pl.when(pl.program_id(0) == 0)
        def _zero_halo():
            zeros = jnp.zeros((align_pad, dim), halo_ref.dtype)
            halo_ref[pl.ds(0, align_pad), :] = zeros
            halo_ref[pl.ds(align_pad + seq_len, align_pad), :] = zeros

        # ---- DownScale (Conv1d(k=stride, s=stride) as matmul) + Snake1d ----
        xr = x_ref[0]                                            # (S, f*D_in) bf16
        y = jnp.dot(xr, ds_w[...], preferred_element_type=jnp.float32) + ds_b[...]
        s = jnp.sin(alpha[...] * y)
        x = y + inv_alpha[...] * (s * s)                         # (S, D) f32

        # ---- FocalBlock: pre-norm + fused in_proj (query | context | gates) ----
        xn = _layernorm(x, ln1_g[...], ln1_b[...])
        qcg = jnp.dot(xn.astype(in_w.dtype), in_w[...],
                      preferred_element_type=jnp.float32) + in_b[...]
        query = qcg[:, :dim]
        context = qcg[:, dim:2 * dim]
        # Small (S, focal_level+1) gates tensor; lets the full (S, n_pad) qcg die
        # before the conv loop (cuts vreg/VMEM pressure).
        gates = qcg[:, 2 * dim:2 * dim + focal_level + 1]

        context_all = jnp.zeros_like(context)
        for lvl in range(focal_level):
            w_l = dw[lvl][0][...]                                # (k, D) f32
            b_l = dw[lvl][1][...]                                # (1, D) f32
            k = ksizes[lvl]
            pad = k // 2
            # sublane-aligned full-tensor store (align_pad is a multiple of 8)
            halo_ref[pl.ds(align_pad, seq_len), :] = context
            acc = jnp.zeros_like(context)
            for j in range(k):                                   # static sublane-offset reads
                off = j - pad
                acc = acc + halo_ref[pl.ds(align_pad + off, seq_len), :] * w_l[j:j + 1, :]
            context = _gelu(acc + b_l)
            context_all = context_all + context * gates[:, lvl:lvl + 1]

        ctx_mean = jnp.mean(context, axis=0, keepdims=True)      # (1, D), mean over seq
        context_all = context_all + _gelu(ctx_mean) * gates[:, focal_level:focal_level + 1]

        # context_proj (1x1 conv) -> modulator; modulate query; modulation out_proj
        modulator = jnp.dot(context_all.astype(ctx_w.dtype), ctx_w[...],
                            preferred_element_type=jnp.float32) + ctx_b[...]
        mod = query * modulator
        mod_out = jnp.dot(mod.astype(om_w.dtype), om_w[...],
                          preferred_element_type=jnp.float32) + om_b[...]
        x1 = x + mod_out                                         # residual 1

        # ---- FeedForward (pre-norm), tiled over the 4*D hidden dimension ----
        # Peak live hidden is (S, ffn_chunk) f32 instead of (S, 4D), same MXU work.
        h_in = _layernorm(x1, ln2_g[...], ln2_b[...]).astype(f1_w.dtype)
        hid = f1_w.shape[1]
        ffn = jnp.zeros((seq_len, dim), jnp.float32)
        for c0 in range(0, hid, ffn_chunk):
            c1 = min(c0 + ffn_chunk, hid)
            hc = jnp.dot(h_in, f1_w[:, c0:c1],
                         preferred_element_type=jnp.float32) + f1_b[:, c0:c1]
            hc = _gelu(hc).astype(f2_w.dtype)
            ffn = ffn + jnp.dot(hc, f2_w[c0:c1, :],
                                preferred_element_type=jnp.float32)
        ffn = ffn + f2_b[...]
        x2 = x1 + ffn                                            # residual 2

        if has_final_proj:
            # encoder out_proj fused into the last layer; lane-dense padded bf16 output
            o_ref[0] = (jnp.dot(x2.astype(po_w.dtype), po_w[...],
                                preferred_element_type=jnp.float32)
                        + po_b[...]).astype(o_ref.dtype)
        else:
            o_ref[0] = x2.astype(o_ref.dtype)

    return kernel


# ---------------------------------------------------------------------------
# Wrapper (pallas_call plumbing + layout glue)
# ---------------------------------------------------------------------------
def _const_spec(shape):
    """Full-array parameter spec.  Constant index_map across the grid => single-buffer
    it (pl.Buffered(1)): no per-step re-DMA and half the param VMEM footprint."""
    idx = lambda b: (0,) * len(shape)
    try:
        return pl.BlockSpec(shape, idx, pipeline_mode=pl.Buffered(1))
    except (AttributeError, TypeError):   # older jax without pipeline_mode support
        return pl.BlockSpec(shape, idx)


def focal_layer(x, lp, focal_level, ksizes, final_proj=None):
    B, S, D_in = x.shape
    f = lp["stride"]
    ksz = f                                                      # kernel_size == stride
    pad = (S - ksz) % f                                          # matches torch _maybe_pad
    if pad > 0:
        x = jnp.pad(x, ((0, 0), (0, pad), (0, 0)))
    S2 = x.shape[1]
    S_out = (S2 - ksz) // f + 1
    xr = x.reshape(B, S_out, f * D_in)                           # flatten conv window
    D = lp["ds_w"].shape[1]

    plist = [lp["ds_w"], lp["ds_b"], lp["alpha"], lp["inv_alpha"],
             lp["ln1_g"], lp["ln1_b"], lp["in_w"], lp["in_b"]]
    for l in range(focal_level):
        plist += [lp["dw"][l][0], lp["dw"][l][1]]
    plist += [lp["ctx_w"], lp["ctx_b"], lp["om_w"], lp["om_b"],
              lp["ln2_g"], lp["ln2_b"], lp["f1_w"], lp["f1_b"],
              lp["f2_w"], lp["f2_b"]]
    if final_proj is not None:
        po_w, po_b = final_proj
        plist += [po_w, po_b]
        D_out = po_w.shape[1]
    else:
        D_out = D
    out_dtype = jnp.bfloat16                                     # bf16 activation stream

    max_pad = max(k // 2 for k in ksizes)
    align_pad = _round_up(max(max_pad, 1), 8)                    # sublane-aligned halo window
    hid = lp["f1_w"].shape[1]
    ffn_chunk = hid if hid <= 512 else 512
    kernel = make_layer_kernel(S_out, D, focal_level, ksizes, align_pad, ffn_chunk,
                               final_proj is not None)

    in_specs = [pl.BlockSpec((1, S_out, f * D_in), lambda b: (b, 0, 0))]
    in_specs += [_const_spec(p.shape) for p in plist]

    return pl.pallas_call(
        kernel,
        out_shape=jax.ShapeDtypeStruct((B, S_out, D_out), out_dtype),
        grid=(B,),
        in_specs=in_specs,
        out_specs=pl.BlockSpec((1, S_out, D_out), lambda b: (b, 0, 0)),
        scratch_shapes=[pltpu.VMEM((S_out + 2 * align_pad, D), jnp.float32)],
        compiler_params=pltpu.CompilerParams(
            dimension_semantics=("parallel",),
            # 64 MiB: comfortably below v5e/v6e's 128 MiB; fine at v7x's 64 MiB because
            # FFN chunking + single-buffered params keep actual use much lower.
            vmem_limit_bytes=64 * 1024 * 1024),
    )(xr, *plist)


def focal_encoder_forward(x, params, focal_level, focal_window, focal_factor, output_dim):
    ksizes = [focal_factor * l + focal_window for l in range(focal_level)]
    out = x.astype(jnp.bfloat16)                                 # bf16 activation stream
    n_layers = len(params["layers"])
    for i, lp in enumerate(params["layers"]):
        final = (params["out_w"], params["out_b"]) if i == n_layers - 1 else None
        out = focal_layer(out, lp, focal_level, ksizes, final_proj=final)
    # dropout p=0.0 -> identity; strip lane padding of the fused out_proj, return f32
    return out[..., :output_dim].astype(jnp.float32)


# ---------------------------------------------------------------------------
# Deterministic synthetic parameter initialization (shapes from __init__)
# ---------------------------------------------------------------------------
def init_params(key, input_dim, output_dim, hidden_dims, downscale_factors,
                focal_window, focal_level, focal_factor):
    keys = iter(jax.random.split(key, 1024))

    def nrm(shape, scale=0.05, dtype=jnp.float32):
        return (scale * jax.random.normal(next(keys), shape)).astype(dtype)

    def near_one(shape):
        return (1.0 + 0.05 * jax.random.normal(next(keys), shape)).astype(jnp.float32)

    W = jnp.bfloat16     # MXU-native storage dtype for matmul weights
    params = {"layers": []}
    d_in = input_dim
    for hd, f in zip(hidden_dims, downscale_factors):
        alpha = near_one((1, hd))
        # fused in_proj = [query | context | gates], zero-padded to a multiple of 128 lanes
        n_in = 2 * hd + focal_level + 1
        n_pad = _round_up(n_in, 128)
        in_w = jnp.zeros((hd, n_pad), jnp.float32).at[:, :n_in].set(nrm((hd, n_in)))
        in_b = jnp.zeros((1, n_pad), jnp.float32).at[:, :n_in].set(nrm((1, n_in)))
        lp = {
            "stride": f,
            # DownScale conv (out,in,k) stored flat as (k*in, out); Snake alpha (1,out)
            "ds_w": nrm((f * d_in, hd), dtype=W), "ds_b": nrm((1, hd)),
            "alpha": alpha, "inv_alpha": (1.0 / (alpha + 1e-9)).astype(jnp.float32),
            # FocalBlock.modulation_norm
            "ln1_g": near_one((1, hd)), "ln1_b": nrm((1, hd)),
            # fused FocalModulation.in_proj
            "in_w": in_w.astype(W), "in_b": in_b,
            # depthwise focal convs, level l: kernel size focal_factor*l+focal_window
            "dw": [(nrm((focal_factor * l + focal_window, hd)), nrm((1, hd)))
                   for l in range(focal_level)],
            # context_proj (1x1 conv) and modulation out_proj
            "ctx_w": nrm((hd, hd), dtype=W), "ctx_b": nrm((1, hd)),
            # feed_forward_norm + FeedForward(hd, 4*hd)
            "om_w": nrm((hd, hd), dtype=W), "om_b": nrm((1, hd)),
            "ln2_g": near_one((1, hd)), "ln2_b": nrm((1, hd)),
            "f1_w": nrm((hd, 4 * hd), dtype=W), "f1_b": nrm((1, 4 * hd)),
            "f2_w": nrm((4 * hd, hd), dtype=W), "f2_b": nrm((1, hd)),
        }
        params["layers"].append(lp)
        d_in = hd
    # encoder out_proj, lane-padded to 128 so the fused store is lane-dense
    dp_out = _round_up(output_dim, 128)
    ow = jnp.zeros((d_in, dp_out), jnp.float32).at[:, :output_dim].set(nrm((d_in, output_dim)))
    ob = jnp.zeros((1, dp_out), jnp.float32).at[:, :output_dim].set(nrm((1, output_dim)))
    params["out_w"] = ow.astype(W)
    params["out_b"] = ob
    return params


# ---------------------------------------------------------------------------
if __name__ == "__main__":
    # Small, module-consistent shapes.
    B, S = 2, 16
    input_dim, output_dim = 32, 8
    hidden_dims = (32, 16)
    downscale_factors = (1, 1)
    focal_window, focal_level, focal_factor = 3, 2, 2

    key = jax.random.PRNGKey(0)
    kx, kp = jax.random.split(key)
    x = jax.random.normal(kx, (B, S, input_dim), dtype=jnp.float32)
    params = init_params(kp, input_dim, output_dim, hidden_dims, downscale_factors,
                         focal_window, focal_level, focal_factor)

    out = focal_encoder_forward(x, params, focal_level, focal_window, focal_factor,
                                output_dim)
    out = jax.block_until_ready(out)

    assert out.shape == (B, S, output_dim), out.shape
    assert bool(jnp.all(jnp.isfinite(out)))
    # TODO(synk): self.gates / self.modulators side-state (store_hidden bookkeeping)
    # is not returned; it does not affect the forward output.
    print("KERNEL_OK")
</pallas_src>

<mosaic_0001>
module attributes {stable_mosaic.version = 11 : i64} {
  func.func @kernel(%arg0: i32, %arg1: memref<1x16x32xbf16, #tpu.memory_space<vmem>>, %arg2: memref<32x32xbf16, #tpu.memory_space<vmem>>, %arg3: memref<1x32xf32, #tpu.memory_space<vmem>>, %arg4: memref<1x32xf32, #tpu.memory_space<vmem>>, %arg5: memref<1x32xf32, #tpu.memory_space<vmem>>, %arg6: memref<1x32xf32, #tpu.memory_space<vmem>>, %arg7: memref<1x32xf32, #tpu.memory_space<vmem>>, %arg8: memref<32x128xbf16, #tpu.memory_space<vmem>>, %arg9: memref<1x128xf32, #tpu.memory_space<vmem>>, %arg10: memref<3x32xf32, #tpu.memory_space<vmem>>, %arg11: memref<1x32xf32, #tpu.memory_space<vmem>>, %arg12: memref<5x32xf32, #tpu.memory_space<vmem>>, %arg13: memref<1x32xf32, #tpu.memory_space<vmem>>, %arg14: memref<32x32xbf16, #tpu.memory_space<vmem>>, %arg15: memref<1x32xf32, #tpu.memory_space<vmem>>, %arg16: memref<32x32xbf16, #tpu.memory_space<vmem>>, %arg17: memref<1x32xf32, #tpu.memory_space<vmem>>, %arg18: memref<1x32xf32, #tpu.memory_space<vmem>>, %arg19: memref<1x32xf32, #tpu.memory_space<vmem>>, %arg20: memref<32x128xbf16, #tpu.memory_space<vmem>>, %arg21: memref<1x128xf32, #tpu.memory_space<vmem>>, %arg22: memref<128x32xbf16, #tpu.memory_space<vmem>>, %arg23: memref<1x32xf32, #tpu.memory_space<vmem>>, %arg24: memref<1x16x32xbf16, #tpu.memory_space<vmem>>, %arg25: memref<32x32xf32, #tpu.memory_space<vmem>>) attributes {dimension_semantics = [#tpu.dimension_semantics<parallel>], iteration_bounds = array<i64: 2>, scalar_prefetch = 0 : i64, scratch_operands = 1 : i64, tpu.core_type = #tpu.core_type<tc>, window_params = [{transform_indices = @transform_0, window_bounds = array<i64: 1, 16, 32>}, {pipeline_mode = #tpu.pipeline_mode<synchronous>, transform_indices = @transform_1, window_bounds = array<i64: 32, 32>}, {pipeline_mode = #tpu.pipeline_mode<synchronous>, transform_indices = @transform_2, window_bounds = array<i64: 1, 32>}, {pipeline_mode = #tpu.pipeline_mode<synchronous>, transform_indices = @transform_3, window_bounds = array<i64: 1, 32>}, {pipeline_mode = #tpu.pipeline_mode<synchronous>, transform_indices = @transform_4, window_bounds = array<i64: 1, 32>}, {pipeline_mode = #tpu.pipeline_mode<synchronous>, transform_indices = @transform_5, window_bounds = array<i64: 1, 32>}, {pipeline_mode = #tpu.pipeline_mode<synchronous>, transform_indices = @transform_6, window_bounds = array<i64: 1, 32>}, {pipeline_mode = #tpu.pipeline_mode<synchronous>, transform_indices = @transform_7, window_bounds = array<i64: 32, 128>}, {pipeline_mode = #tpu.pipeline_mode<synchronous>, transform_indices = @transform_8, window_bounds = array<i64: 1, 128>}, {pipeline_mode = #tpu.pipeline_mode<synchronous>, transform_indices = @transform_9, window_bounds = array<i64: 3, 32>}, {pipeline_mode = #tpu.pipeline_mode<synchronous>, transform_indices = @transform_10, window_bounds = array<i64: 1, 32>}, {pipeline_mode = #tpu.pipeline_mode<synchronous>, transform_indices = @transform_11, window_bounds = array<i64: 5, 32>}, {pipeline_mode = #tpu.pipeline_mode<synchronous>, transform_indices = @transform_12, window_bounds = array<i64: 1, 32>}, {pipeline_mode = #tpu.pipeline_mode<synchronous>, transform_indices = @transform_13, window_bounds = array<i64: 32, 32>}, {pipeline_mode = #tpu.pipeline_mode<synchronous>, transform_indices = @transform_14, window_bounds = array<i64: 1, 32>}, {pipeline_mode = #tpu.pipeline_mode<synchronous>, transform_indices = @transform_15, window_bounds = array<i64: 32, 32>}, {pipeline_mode = #tpu.pipeline_mode<synchronous>, transform_indices = @transform_16, window_bounds = array<i64: 1, 32>}, {pipeline_mode = #tpu.pipeline_mode<synchronous>, transform_indices = @transform_17, window_bounds = array<i64: 1, 32>}, {pipeline_mode = #tpu.pipeline_mode<synchronous>, transform_indices = @transform_18, window_bounds = array<i64: 1, 32>}, {pipeline_mode = #tpu.pipeline_mode<synchronous>, transform_indices = @transform_19, window_bounds = array<i64: 32, 128>}, {pipeline_mode = #tpu.pipeline_mode<synchronous>, transform_indices = @transform_20, window_bounds = array<i64: 1, 128>}, {pipeline_mode = #tpu.pipeline_mode<synchronous>, transform_indices = @transform_21, window_bounds = array<i64: 128, 32>}, {pipeline_mode = #tpu.pipeline_mode<synchronous>, transform_indices = @transform_22, window_bounds = array<i64: 1, 32>}, {transform_indices = @transform_23, window_bounds = array<i64: 1, 16, 32>}]} {
    %c0_i32 = arith.constant 0 : i32
    %0 = arith.cmpi eq, %arg0, %c0_i32 : i32
    %1 = arith.extui %0 : i1 to i32
    %c0_i32_0 = arith.constant 0 : i32
    %2 = arith.cmpi ne, %1, %c0_i32_0 : i32
    scf.if %2 {
      %cst_102 = arith.constant 0.000000e+00 : f32
      %227 = vector.broadcast %cst_102 : f32 to vector<8x32xf32>
      %c0_103 = arith.constant 0 : index
      %c0_104 = arith.constant 0 : index
      %228 = vector.load %arg25[%c0_103, %c0_104] : memref<32x32xf32, #tpu.memory_space<vmem>>, vector<8x32xf32>
      tpu.vector_store %arg25[%c0_103, %c0_104], %227 {strides = array<i32>} : memref<32x32xf32, #tpu.memory_space<vmem>>, vector<8x32xf32>,
      %c24 = arith.constant 24 : index
      %c0_105 = arith.constant 0 : index
      %229 = vector.load %arg25[%c24, %c0_105] : memref<32x32xf32, #tpu.memory_space<vmem>>, vector<8x32xf32>
      tpu.vector_store %arg25[%c24, %c0_105], %227 {strides = array<i32>} : memref<32x32xf32, #tpu.memory_space<vmem>>, vector<8x32xf32>,
    } else {
    }
    %c0 = arith.constant 0 : index
    %c0_1 = arith.constant 0 : index
    %c0_2 = arith.constant 0 : index
    %3 = vector.load %arg1[%c0, %c0_1, %c0_2] : memref<1x16x32xbf16, #tpu.memory_space<vmem>>, vector<1x16x32xbf16>
    %4 = vector.shape_cast %3 : vector<1x16x32xbf16> to vector<16x32xbf16>
    %c0_3 = arith.constant 0 : index
    %c0_4 = arith.constant 0 : index
    %5 = vector.load %arg2[%c0_3, %c0_4] : memref<32x32xbf16, #tpu.memory_space<vmem>>, vector<32x32xbf16>
    %cst = arith.constant dense<0.000000e+00> : vector<16x32xf32>
    %6 = tpu.matmul %4, %5, %cst {dimension_numbers = #tpu.dot_dimension_numbers<[1], [0], [0], [1], [0, 0, 1, 1], [], []>} : vector<16x32xbf16>, vector<32x32xbf16>, vector<16x32xf32> -> vector<16x32xf32>
    %c0_5 = arith.constant 0 : index
    %c0_6 = arith.constant 0 : index
    %7 = vector.load %arg3[%c0_5, %c0_6] : memref<1x32xf32, #tpu.memory_space<vmem>>, vector<1x32xf32>
    %8 = vector.broadcast %7 : vector<1x32xf32> to vector<16x32xf32>
    %9 = arith.addf %6, %8 : vector<16x32xf32>
    %c0_7 = arith.constant 0 : index
    %c0_8 = arith.constant 0 : index
    %10 = vector.load %arg4[%c0_7, %c0_8] : memref<1x32xf32, #tpu.memory_space<vmem>>, vector<1x32xf32>
    %11 = vector.broadcast %10 : vector<1x32xf32> to vector<16x32xf32>
    %12 = arith.mulf %11, %9 : vector<16x32xf32>
    %13 = math.sin %12 : vector<16x32xf32>
    %c0_9 = arith.constant 0 : index
    %c0_10 = arith.constant 0 : index
    %14 = vector.load %arg5[%c0_9, %c0_10] : memref<1x32xf32, #tpu.memory_space<vmem>>, vector<1x32xf32>
    %15 = arith.mulf %13, %13 : vector<16x32xf32>
    %16 = vector.broadcast %14 : vector<1x32xf32> to vector<16x32xf32>
    %17 = arith.mulf %16, %15 : vector<16x32xf32>
    %18 = arith.addf %9, %17 : vector<16x32xf32>
    %c0_11 = arith.constant 0 : index
    %c0_12 = arith.constant 0 : index
    %19 = vector.load %arg6[%c0_11, %c0_12] : memref<1x32xf32, #tpu.memory_space<vmem>>, vector<1x32xf32>
    %c0_13 = arith.constant 0 : index
    %c0_14 = arith.constant 0 : index
    %20 = vector.load %arg7[%c0_13, %c0_14] : memref<1x32xf32, #tpu.memory_space<vmem>>, vector<1x32xf32>
    %cst_15 = arith.constant dense<0.000000e+00> : vector<16xf32>
    %21 = vector.multi_reduction <add>, %18, %cst_15 [1] : vector<16x32xf32> to vector<16xf32>
    %22 = vector.shape_cast %21 : vector<16xf32> to vector<16x1xf32>
    %cst_16 = arith.constant 3.200000e+01 : f32
    %23 = vector.broadcast %cst_16 : f32 to vector<16x1xf32>
    %24 = arith.divf %22, %23 : vector<16x1xf32>
    %25 = vector.broadcast %24 : vector<16x1xf32> to vector<16x32xf32>
    %26 = arith.subf %18, %25 : vector<16x32xf32>
    %27 = arith.mulf %26, %26 : vector<16x32xf32>
    %cst_17 = arith.constant dense<0.000000e+00> : vector<16xf32>
    %28 = vector.multi_reduction <add>, %27, %cst_17 [1] : vector<16x32xf32> to vector<16xf32>
    %29 = vector.shape_cast %28 : vector<16xf32> to vector<16x1xf32>
    %cst_18 = arith.constant 3.200000e+01 : f32
    %30 = vector.broadcast %cst_18 : f32 to vector<16x1xf32>
    %31 = arith.divf %29, %30 : vector<16x1xf32>
    %cst_19 = arith.constant 9.99999974E-6 : f32
    %32 = vector.broadcast %cst_19 : f32 to vector<16x1xf32>
    %33 = arith.addf %31, %32 : vector<16x1xf32>
    %34 = math.rsqrt %33 : vector<16x1xf32>
    %35 = vector.broadcast %34 : vector<16x1xf32> to vector<16x32xf32>
    %36 = arith.mulf %26, %35 : vector<16x32xf32>
    %37 = vector.broadcast %19 : vector<1x32xf32> to vector<16x32xf32>
    %38 = arith.mulf %36, %37 : vector<16x32xf32>
    %39 = vector.broadcast %20 : vector<1x32xf32> to vector<16x32xf32>
    %40 = arith.addf %38, %39 : vector<16x32xf32>
    %41 = arith.truncf %40 : vector<16x32xf32> to vector<16x32xbf16>
    %c0_20 = arith.constant 0 : index
    %c0_21 = arith.constant 0 : index
    %42 = vector.load %arg8[%c0_20, %c0_21] : memref<32x128xbf16, #tpu.memory_space<vmem>>, vector<32x128xbf16>
    %cst_22 = arith.constant dense<0.000000e+00> : vector<16x128xf32>
    %43 = tpu.matmul %41, %42, %cst_22 {dimension_numbers = #tpu.dot_dimension_numbers<[1], [0], [0], [1], [0, 0, 1, 1], [], []>} : vector<16x32xbf16>, vector<32x128xbf16>, vector<16x128xf32> -> vector<16x128xf32>
    %c0_23 = arith.constant 0 : index
    %c0_24 = arith.constant 0 : index
    %44 = vector.load %arg9[%c0_23, %c0_24] : memref<1x128xf32, #tpu.memory_space<vmem>>, vector<1x128xf32>
    %45 = vector.broadcast %44 : vector<1x128xf32> to vector<16x128xf32>
    %46 = arith.addf %43, %45 : vector<16x128xf32>
    %47 = vector.extract_strided_slice %46 {offsets = [0, 0], sizes = [16, 32], strides = [1, 1]} : vector<16x128xf32> to vector<16x32xf32>
    %48 = vector.extract_strided_slice %46 {offsets = [0, 32], sizes = [16, 32], strides = [1, 1]} : vector<16x128xf32> to vector<16x32xf32>
    %49 = vector.extract_strided_slice %46 {offsets = [0, 64], sizes = [16, 3], strides = [1, 1]} : vector<16x128xf32> to vector<16x3xf32>
    %cst_25 = arith.constant 0.000000e+00 : f32
    %50 = vector.broadcast %cst_25 : f32 to vector<16x32xf32>
    %c0_26 = arith.constant 0 : index
    %c0_27 = arith.constant 0 : index
    %51 = vector.load %arg10[%c0_26, %c0_27] : memref<3x32xf32, #tpu.memory_space<vmem>>, vector<3x32xf32>
    %c0_28 = arith.constant 0 : index
    %c0_29 = arith.constant 0 : index
    %52 = vector.load %arg11[%c0_28, %c0_29] : memref<1x32xf32, #tpu.memory_space<vmem>>, vector<1x32xf32>
    %c8 = arith.constant 8 : index
    %c0_30 = arith.constant 0 : index
    %53 = vector.load %arg25[%c8, %c0_30] : memref<32x32xf32, #tpu.memory_space<vmem>>, vector<16x32xf32>
    tpu.vector_store %arg25[%c8, %c0_30], %48 {strides = array<i32>} : memref<32x32xf32, #tpu.memory_space<vmem>>, vector<16x32xf32>,
    %cst_31 = arith.constant 0.000000e+00 : f32
    %54 = vector.broadcast %cst_31 : f32 to vector<16x32xf32>
    %c7 = arith.constant 7 : index
    %c0_32 = arith.constant 0 : index
    %55 = vector.load %arg25[%c7, %c0_32] : memref<32x32xf32, #tpu.memory_space<vmem>>, vector<16x32xf32>
    %56 = vector.extract_strided_slice %51 {offsets = [0, 0], sizes = [1, 32], strides = [1, 1]} : vector<3x32xf32> to vector<1x32xf32>
    %57 = vector.broadcast %56 : vector<1x32xf32> to vector<16x32xf32>
    %58 = arith.mulf %55, %57 : vector<16x32xf32>
    %59 = arith.addf %54, %58 : vector<16x32xf32>
    %c8_33 = arith.constant 8 : index
    %c0_34 = arith.constant 0 : index
    %60 = vector.load %arg25[%c8_33, %c0_34] : memref<32x32xf32, #tpu.memory_space<vmem>>, vector<16x32xf32>
    %61 = vector.extract_strided_slice %51 {offsets = [1, 0], sizes = [1, 32], strides = [1, 1]} : vector<3x32xf32> to vector<1x32xf32>
    %62 = vector.broadcast %61 : vector<1x32xf32> to vector<16x32xf32>
    %63 = arith.mulf %60, %62 : vector<16x32xf32>
    %64 = arith.addf %59, %63 : vector<16x32xf32>
    %c9 = arith.constant 9 : index
    %c0_35 = arith.constant 0 : index
    %65 = vector.load %arg25[%c9, %c0_35] : memref<32x32xf32, #tpu.memory_space<vmem>>, vector<16x32xf32>
    %66 = vector.extract_strided_slice %51 {offsets = [2, 0], sizes = [1, 32], strides = [1, 1]} : vector<3x32xf32> to vector<1x32xf32>
    %67 = vector.broadcast %66 : vector<1x32xf32> to vector<16x32xf32>
    %68 = arith.mulf %65, %67 : vector<16x32xf32>
    %69 = arith.addf %64, %68 : vector<16x32xf32>
    %70 = vector.broadcast %52 : vector<1x32xf32> to vector<16x32xf32>
    %71 = arith.addf %69, %70 : vector<16x32xf32>
    %cst_36 = arith.constant 5.000000e-01 : f32
    %72 = vector.broadcast %cst_36 : f32 to vector<16x32xf32>
    %73 = arith.mulf %72, %71 : vector<16x32xf32>
    %cst_37 = arith.constant 4.471500e-02 : f32
    %74 = vector.broadcast %cst_37 : f32 to vector<16x32xf32>
    %75 = arith.mulf %74, %71 : vector<16x32xf32>
    %76 = arith.mulf %75, %71 : vector<16x32xf32>
    %77 = arith.mulf %76, %71 : vector<16x32xf32>
    %78 = arith.addf %71, %77 : vector<16x32xf32>
    %cst_38 = arith.constant 0.797884583 : f32
    %79 = vector.broadcast %cst_38 : f32 to vector<16x32xf32>
    %80 = arith.mulf %79, %78 : vector<16x32xf32>
    %81 = math.tanh %80 : vector<16x32xf32>
    %cst_39 = arith.constant 1.000000e+00 : f32
    %82 = vector.broadcast %cst_39 : f32 to vector<16x32xf32>
    %83 = arith.addf %82, %81 : vector<16x32xf32>
    %84 = arith.mulf %73, %83 : vector<16x32xf32>
    %85 = vector.extract_strided_slice %49 {offsets = [0, 0], sizes = [16, 1], strides = [1, 1]} : vector<16x3xf32> to vector<16x1xf32>
    %86 = vector.broadcast %85 : vector<16x1xf32> to vector<16x32xf32>
    %87 = arith.mulf %84, %86 : vector<16x32xf32>
    %88 = arith.addf %50, %87 : vector<16x32xf32>
    %c0_40 = arith.constant 0 : index
    %c0_41 = arith.constant 0 : index
    %89 = vector.load %arg12[%c0_40, %c0_41] : memref<5x32xf32, #tpu.memory_space<vmem>>, vector<5x32xf32>
    %c0_42 = arith.constant 0 : index
    %c0_43 = arith.constant 0 : index
    %90 = vector.load %arg13[%c0_42, %c0_43] : memref<1x32xf32, #tpu.memory_space<vmem>>, vector<1x32xf32>
    %c8_44 = arith.constant 8 : index
    %c0_45 = arith.constant 0 : index
    %91 = vector.load %arg25[%c8_44, %c0_45] : memref<32x32xf32, #tpu.memory_space<vmem>>, vector<16x32xf32>
    tpu.vector_store %arg25[%c8_44, %c0_45], %84 {strides = array<i32>} : memref<32x32xf32, #tpu.memory_space<vmem>>, vector<16x32xf32>,
    %cst_46 = arith.constant 0.000000e+00 : f32
    %92 = vector.broadcast %cst_46 : f32 to vector<16x32xf32>
    %c6 = arith.constant 6 : index
    %c0_47 = arith.constant 0 : index
    %93 = vector.load %arg25[%c6, %c0_47] : memref<32x32xf32, #tpu.memory_space<vmem>>, vector<16x32xf32>
    %94 = vector.extract_strided_slice %89 {offsets = [0, 0], sizes = [1, 32], strides = [1, 1]} : vector<5x32xf32> to vector<1x32xf32>
    %95 = vector.broadcast %94 : vector<1x32xf32> to vector<16x32xf32>
    %96 = arith.mulf %93, %95 : vector<16x32xf32>
    %97 = arith.addf %92, %96 : vector<16x32xf32>
    %c7_48 = arith.constant 7 : index
    %c0_49 = arith.constant 0 : index
    %98 = vector.load %arg25[%c7_48, %c0_49] : memref<32x32xf32, #tpu.memory_space<vmem>>, vector<16x32xf32>
    %99 = vector.extract_strided_slice %89 {offsets = [1, 0], sizes = [1, 32], strides = [1, 1]} : vector<5x32xf32> to vector<1x32xf32>
    %100 = vector.broadcast %99 : vector<1x32xf32> to vector<16x32xf32>
    %101 = arith.mulf %98, %100 : vector<16x32xf32>
    %102 = arith.addf %97, %101 : vector<16x32xf32>
    %c8_50 = arith.constant 8 : index
    %c0_51 = arith.constant 0 : index
    %103 = vector.load %arg25[%c8_50, %c0_51] : memref<32x32xf32, #tpu.memory_space<vmem>>, vector<16x32xf32>
    %104 = vector.extract_strided_slice %89 {offsets = [2, 0], sizes = [1, 32], strides = [1, 1]} : vector<5x32xf32> to vector<1x32xf32>
    %105 = vector.broadcast %104 : vector<1x32xf32> to vector<16x32xf32>
    %106 = arith.mulf %103, %105 : vector<16x32xf32>
    %107 = arith.addf %102, %106 : vector<16x32xf32>
    %c9_52 = arith.constant 9 : index
    %c0_53 = arith.constant 0 : index
    %108 = vector.load %arg25[%c9_52, %c0_53] : memref<32x32xf32, #tpu.memory_space<vmem>>, vector<16x32xf32>
    %109 = vector.extract_strided_slice %89 {offsets = [3, 0], sizes = [1, 32], strides = [1, 1]} : vector<5x32xf32> to vector<1x32xf32>
    %110 = vector.broadcast %109 : vector<1x32xf32> to vector<16x32xf32>
    %111 = arith.mulf %108, %110 : vector<16x32xf32>
    %112 = arith.addf %107, %111 : vector<16x32xf32>
    %c10 = arith.constant 10 : index
    %c0_54 = arith.constant 0 : index
    %113 = vector.load %arg25[%c10, %c0_54] : memref<32x32xf32, #tpu.memory_space<vmem>>, vector<16x32xf32>
    %114 = vector.extract_strided_slice %89 {offsets = [4, 0], sizes = [1, 32], strides = [1, 1]} : vector<5x32xf32> to vector<1x32xf32>
    %115 = vector.broadcast %114 : vector<1x32xf32> to vector<16x32xf32>
    %116 = arith.mulf %113, %115 : vector<16x32xf32>
    %117 = arith.addf %112, %116 : vector<16x32xf32>
    %118 = vector.broadcast %90 : vector<1x32xf32> to vector<16x32xf32>
    %119 = arith.addf %117, %118 : vector<16x32xf32>
    %cst_55 = arith.constant 5.000000e-01 : f32
    %120 = vector.broadcast %cst_55 : f32 to vector<16x32xf32>
    %121 = arith.mulf %120, %119 : vector<16x32xf32>
    %cst_56 = arith.constant 4.471500e-02 : f32
    %122 = vector.broadcast %cst_56 : f32 to vector<16x32xf32>
    %123 = arith.mulf %122, %119 : vector<16x32xf32>
    %124 = arith.mulf %123, %119 : vector<16x32xf32>
    %125 = arith.mulf %124, %119 : vector<16x32xf32>
    %126 = arith.addf %119, %125 : vector<16x32xf32>
    %cst_57 = arith.constant 0.797884583 : f32
    %127 = vector.broadcast %cst_57 : f32 to vector<16x32xf32>
    %128 = arith.mulf %127, %126 : vector<16x32xf32>
    %129 = math.tanh %128 : vector<16x32xf32>
    %cst_58 = arith.constant 1.000000e+00 : f32
    %130 = vector.broadcast %cst_58 : f32 to vector<16x32xf32>
    %131 = arith.addf %130, %129 : vector<16x32xf32>
    %132 = arith.mulf %121, %131 : vector<16x32xf32>
    %133 = vector.extract_strided_slice %49 {offsets = [0, 1], sizes = [16, 1], strides = [1, 1]} : vector<16x3xf32> to vector<16x1xf32>
    %134 = vector.broadcast %133 : vector<16x1xf32> to vector<16x32xf32>
    %135 = arith.mulf %132, %134 : vector<16x32xf32>
    %136 = arith.addf %88, %135 : vector<16x32xf32>
    %cst_59 = arith.constant dense<0.000000e+00> : vector<32xf32>
    %137 = vector.multi_reduction <add>, %132, %cst_59 [0] : vector<16x32xf32> to vector<32xf32>
    %138 = vector.shape_cast %137 : vector<32xf32> to vector<1x32xf32>
    %cst_60 = arith.constant 1.600000e+01 : f32
    %139 = vector.broadcast %cst_60 : f32 to vector<1x32xf32>
    %140 = arith.divf %138, %139 : vector<1x32xf32>
    %cst_61 = arith.constant 5.000000e-01 : f32
    %141 = vector.broadcast %cst_61 : f32 to vector<1x32xf32>
    %142 = arith.mulf %141, %140 : vector<1x32xf32>
    %cst_62 = arith.constant 4.471500e-02 : f32
    %143 = vector.broadcast %cst_62 : f32 to vector<1x32xf32>
    %144 = arith.mulf %143, %140 : vector<1x32xf32>
    %145 = arith.mulf %144, %140 : vector<1x32xf32>
    %146 = arith.mulf %145, %140 : vector<1x32xf32>
    %147 = arith.addf %140, %146 : vector<1x32xf32>
    %cst_63 = arith.constant 0.797884583 : f32
    %148 = vector.broadcast %cst_63 : f32 to vector<1x32xf32>
    %149 = arith.mulf %148, %147 : vector<1x32xf32>
    %150 = math.tanh %149 : vector<1x32xf32>
    %cst_64 = arith.constant 1.000000e+00 : f32
    %151 = vector.broadcast %cst_64 : f32 to vector<1x32xf32>
    %152 = arith.addf %151, %150 : vector<1x32xf32>
    %153 = arith.mulf %142, %152 : vector<1x32xf32>
    %154 = vector.extract_strided_slice %49 {offsets = [0, 2], sizes = [16, 1], strides = [1, 1]} : vector<16x3xf32> to vector<16x1xf32>
    %155 = vector.broadcast %153 : vector<1x32xf32> to vector<16x32xf32>
    %156 = vector.broadcast %154 : vector<16x1xf32> to vector<16x32xf32>
    %157 = arith.mulf %155, %156 : vector<16x32xf32>
    %158 = arith.addf %136, %157 : vector<16x32xf32>
    %159 = arith.truncf %158 : vector<16x32xf32> to vector<16x32xbf16>
    %c0_65 = arith.constant 0 : index
    %c0_66 = arith.constant 0 : index
    %160 = vector.load %arg14[%c0_65, %c0_66] : memref<32x32xbf16, #tpu.memory_space<vmem>>, vector<32x32xbf16>
    %cst_67 = arith.constant dense<0.000000e+00> : vector<16x32xf32>
    %161 = tpu.matmul %159, %160, %cst_67 {dimension_numbers = #tpu.dot_dimension_numbers<[1], [0], [0], [1], [0, 0, 1, 1], [], []>} : vector<16x32xbf16>, vector<32x32xbf16>, vector<16x32xf32> -> vector<16x32xf32>
    %c0_68 = arith.constant 0 : index
    %c0_69 = arith.constant 0 : index
    %162 = vector.load %arg15[%c0_68, %c0_69] : memref<1x32xf32, #tpu.memory_space<vmem>>, vector<1x32xf32>
    %163 = vector.broadcast %162 : vector<1x32xf32> to vector<16x32xf32>
    %164 = arith.addf %161, %163 : vector<16x32xf32>
    %165 = arith.mulf %47, %164 : vector<16x32xf32>
    %166 = arith.truncf %165 : vector<16x32xf32> to vector<16x32xbf16>
    %c0_70 = arith.constant 0 : index
    %c0_71 = arith.constant 0 : index
    %167 = vector.load %arg16[%c0_70, %c0_71] : memref<32x32xbf16, #tpu.memory_space<vmem>>, vector<32x32xbf16>
    %cst_72 = arith.constant dense<0.000000e+00> : vector<16x32xf32>
    %168 = tpu.matmul %166, %167, %cst_72 {dimension_numbers = #tpu.dot_dimension_numbers<[1], [0], [0], [1], [0, 0, 1, 1], [], []>} : vector<16x32xbf16>, vector<32x32xbf16>, vector<16x32xf32> -> vector<16x32xf32>
    %c0_73 = arith.constant 0 : index
    %c0_74 = arith.constant 0 : index
    %169 = vector.load %arg17[%c0_73, %c0_74] : memref<1x32xf32, #tpu.memory_space<vmem>>, vector<1x32xf32>
    %170 = vector.broadcast %169 : vector<1x32xf32> to vector<16x32xf32>
    %171 = arith.addf %168, %170 : vector<16x32xf32>
    %172 = arith.addf %18, %171 : vector<16x32xf32>
    %c0_75 = arith.constant 0 : index
    %c0_76 = arith.constant 0 : index
    %173 = vector.load %arg18[%c0_75, %c0_76] : memref<1x32xf32, #tpu.memory_space<vmem>>, vector<1x32xf32>
    %c0_77 = arith.constant 0 : index
    %c0_78 = arith.constant 0 : index
    %174 = vector.load %arg19[%c0_77, %c0_78] : memref<1x32xf32, #tpu.memory_space<vmem>>, vector<1x32xf32>
    %cst_79 = arith.constant dense<0.000000e+00> : vector<16xf32>
    %175 = vector.multi_reduction <add>, %172, %cst_79 [1] : vector<16x32xf32> to vector<16xf32>
    %176 = vector.shape_cast %175 : vector<16xf32> to vector<16x1xf32>
    %cst_80 = arith.constant 3.200000e+01 : f32
    %177 = vector.broadcast %cst_80 : f32 to vector<16x1xf32>
    %178 = arith.divf %176, %177 : vector<16x1xf32>
    %179 = vector.broadcast %178 : vector<16x1xf32> to vector<16x32xf32>
    %180 = arith.subf %172, %179 : vector<16x32xf32>
    %181 = arith.mulf %180, %180 : vector<16x32xf32>
    %cst_81 = arith.constant dense<0.000000e+00> : vector<16xf32>
    %182 = vector.multi_reduction <add>, %181, %cst_81 [1] : vector<16x32xf32> to vector<16xf32>
    %183 = vector.shape_cast %182 : vector<16xf32> to vector<16x1xf32>
    %cst_82 = arith.constant 3.200000e+01 : f32
    %184 = vector.broadcast %cst_82 : f32 to vector<16x1xf32>
    %185 = arith.divf %183, %184 : vector<16x1xf32>
    %cst_83 = arith.constant 9.99999974E-6 : f32
    %186 = vector.broadcast %cst_83 : f32 to vector<16x1xf32>
    %187 = arith.addf %185, %186 : vector<16x1xf32>
    %188 = math.rsqrt %187 : vector<16x1xf32>
    %189 = vector.broadcast %188 : vector<16x1xf32> to vector<16x32xf32>
    %190 = arith.mulf %180, %189 : vector<16x32xf32>
    %191 = vector.broadcast %173 : vector<1x32xf32> to vector<16x32xf32>
    %192 = arith.mulf %190, %191 : vector<16x32xf32>
    %193 = vector.broadcast %174 : vector<1x32xf32> to vector<16x32xf32>
    %194 = arith.addf %192, %193 : vector<16x32xf32>
    %195 = arith.truncf %194 : vector<16x32xf32> to vector<16x32xbf16>
    %cst_84 = arith.constant 0.000000e+00 : f32
    %196 = vector.broadcast %cst_84 : f32 to vector<16x32xf32>
    %c0_85 = arith.constant 0 : index
    %c0_86 = arith.constant 0 : index
    %197 = vector.load %arg20[%c0_85, %c0_86] : memref<32x128xbf16, #tpu.memory_space<vmem>>, vector<32x128xbf16>
    %cst_87 = arith.constant dense<0.000000e+00> : vector<16x128xf32>
    %198 = tpu.matmul %195, %197, %cst_87 {dimension_numbers = #tpu.dot_dimension_numbers<[1], [0], [0], [1], [0, 0, 1, 1], [], []>} : vector<16x32xbf16>, vector<32x128xbf16>, vector<16x128xf32> -> vector<16x128xf32>
    %c0_88 = arith.constant 0 : index
    %c0_89 = arith.constant 0 : index
    %199 = vector.load %arg21[%c0_88, %c0_89] : memref<1x128xf32, #tpu.memory_space<vmem>>, vector<1x128xf32>
    %200 = vector.broadcast %199 : vector<1x128xf32> to vector<16x128xf32>
    %201 = arith.addf %198, %200 : vector<16x128xf32>
    %cst_90 = arith.constant 5.000000e-01 : f32
    %202 = vector.broadcast %cst_90 : f32 to vector<16x128xf32>
    %203 = arith.mulf %202, %201 : vector<16x128xf32>
    %cst_91 = arith.constant 4.471500e-02 : f32
    %204 = vector.broadcast %cst_91 : f32 to vector<16x128xf32>
    %205 = arith.mulf %204, %201 : vector<16x128xf32>
    %206 = arith.mulf %205, %201 : vector<16x128xf32>
    %207 = arith.mulf %206, %201 : vector<16x128xf32>
    %208 = arith.addf %201, %207 : vector<16x128xf32>
    %cst_92 = arith.constant 0.797884583 : f32
    %209 = vector.broadcast %cst_92 : f32 to vector<16x128xf32>
    %210 = arith.mulf %209, %208 : vector<16x128xf32>
    %211 = math.tanh %210 : vector<16x128xf32>
    %cst_93 = arith.constant 1.000000e+00 : f32
    %212 = vector.broadcast %cst_93 : f32 to vector<16x128xf32>
    %213 = arith.addf %212, %211 : vector<16x128xf32>
    %214 = arith.mulf %203, %213 : vector<16x128xf32>
    %215 = arith.truncf %214 : vector<16x128xf32> to vector<16x128xbf16>
    %c0_94 = arith.constant 0 : index
    %c0_95 = arith.constant 0 : index
    %216 = vector.load %arg22[%c0_94, %c0_95] : memref<128x32xbf16, #tpu.memory_space<vmem>>, vector<128x32xbf16>
    %cst_96 = arith.constant dense<0.000000e+00> : vector<16x32xf32>
    %217 = tpu.matmul %215, %216, %cst_96 {dimension_numbers = #tpu.dot_dimension_numbers<[1], [0], [0], [1], [0, 0, 1, 1], [], []>} : vector<16x128xbf16>, vector<128x32xbf16>, vector<16x32xf32> -> vector<16x32xf32>
    %218 = arith.addf %196, %217 : vector<16x32xf32>
    %c0_97 = arith.constant 0 : index
    %c0_98 = arith.constant 0 : index
    %219 = vector.load %arg23[%c0_97, %c0_98] : memref<1x32xf32, #tpu.memory_space<vmem>>, vector<1x32xf32>
    %220 = vector.broadcast %219 : vector<1x32xf32> to vector<16x32xf32>
    %221 = arith.addf %218, %220 : vector<16x32xf32>
    %222 = arith.addf %172, %221 : vector<16x32xf32>
    %223 = arith.truncf %222 : vector<16x32xf32> to vector<16x32xbf16>
    %c0_99 = arith.constant 0 : index
    %c0_100 = arith.constant 0 : index
    %c0_101 = arith.constant 0 : index
    %224 = vector.load %arg24[%c0_99, %c0_100, %c0_101] : memref<1x16x32xbf16, #tpu.memory_space<vmem>>, vector<1x16x32xbf16>
    %225 = vector.shape_cast %224 : vector<1x16x32xbf16> to vector<16x32xbf16>
    %226 = vector.shape_cast %223 : vector<16x32xbf16> to vector<1x16x32xbf16>
    tpu.vector_store %arg24[%c0_99, %c0_100, %c0_101], %226 {strides = array<i32>} : memref<1x16x32xbf16, #tpu.memory_space<vmem>>, vector<1x16x32xbf16>,
    return
  }
  func.func @transform_0(%arg0: i32) -> (i32, i32, i32) {
    %c0_i32 = arith.constant 0 : i32
    %c0_i32_0 = arith.constant 0 : i32
    %c0_i32_1 = arith.constant 0 : i32
    return %arg0, %c0_i32, %c0_i32_0 : i32, i32, i32
  }
  func.func @transform_1(%arg0: i32) -> (i32, i32) {
    %c0_i32 = arith.constant 0 : i32
    %c0_i32_0 = arith.constant 0 : i32
    %c0_i32_1 = arith.constant 0 : i32
    return %c0_i32, %c0_i32_0 : i32, i32
  }
  func.func @transform_2(%arg0: i32) -> (i32, i32) {
    %c0_i32 = arith.constant 0 : i32
    %c0_i32_0 = arith.constant 0 : i32
    %c0_i32_1 = arith.constant 0 : i32
    return %c0_i32, %c0_i32_0 : i32, i32
  }
  func.func @transform_3(%arg0: i32) -> (i32, i32) {
    %c0_i32 = arith.constant 0 : i32
    %c0_i32_0 = arith.constant 0 : i32
    %c0_i32_1 = arith.constant 0 : i32
    return %c0_i32, %c0_i32_0 : i32, i32
  }
  func.func @transform_4(%arg0: i32) -> (i32, i32) {
    %c0_i32 = arith.constant 0 : i32
    %c0_i32_0 = arith.constant 0 : i32
    %c0_i32_1 = arith.constant 0 : i32
    return %c0_i32, %c0_i32_0 : i32, i32
  }
  func.func @transform_5(%arg0: i32) -> (i32, i32) {
    %c0_i32 = arith.constant 0 : i32
    %c0_i32_0 = arith.constant 0 : i32
    %c0_i32_1 = arith.constant 0 : i32
    return %c0_i32, %c0_i32_0 : i32, i32
  }
  func.func @transform_6(%arg0: i32) -> (i32, i32) {
    %c0_i32 = arith.constant 0 : i32
    %c0_i32_0 = arith.constant 0 : i32
    %c0_i32_1 = arith.constant 0 : i32
    return %c0_i32, %c0_i32_0 : i32, i32
  }
  func.func @transform_7(%arg0: i32) -> (i32, i32) {
    %c0_i32 = arith.constant 0 : i32
    %c0_i32_0 = arith.constant 0 : i32
    %c0_i32_1 = arith.constant 0 : i32
    return %c0_i32, %c0_i32_0 : i32, i32
  }
  func.func @transform_8(%arg0: i32) -> (i32, i32) {
    %c0_i32 = arith.constant 0 : i32
    %c0_i32_0 = arith.constant 0 : i32
    %c0_i32_1 = arith.constant 0 : i32
    return %c0_i32, %c0_i32_0 : i32, i32
  }
  func.func @transform_9(%arg0: i32) -> (i32, i32) {
    %c0_i32 = arith.constant 0 : i32
    %c0_i32_0 = arith.constant 0 : i32
    %c0_i32_1 = arith.constant 0 : i32
    return %c0_i32, %c0_i32_0 : i32, i32
  }
  func.func @transform_10(%arg0: i32) -> (i32, i32) {
    %c0_i32 = arith.constant 0 : i32
    %c0_i32_0 = arith.constant 0 : i32
    %c0_i32_1 = arith.constant 0 : i32
    return %c0_i32, %c0_i32_0 : i32, i32
  }
  func.func @transform_11(%arg0: i32) -> (i32, i32) {
    %c0_i32 = arith.constant 0 : i32
    %c0_i32_0 = arith.constant 0 : i32
    %c0_i32_1 = arith.constant 0 : i32
    return %c0_i32, %c0_i32_0 : i32, i32
  }
  func.func @transform_12(%arg0: i32) -> (i32, i32) {
    %c0_i32 = arith.constant 0 : i32
    %c0_i32_0 = arith.constant 0 : i32
    %c0_i32_1 = arith.constant 0 : i32
    return %c0_i32, %c0_i32_0 : i32, i32
  }
  func.func @transform_13(%arg0: i32) -> (i32, i32) {
    %c0_i32 = arith.constant 0 : i32
    %c0_i32_0 = arith.constant 0 : i32
    %c0_i32_1 = arith.constant 0 : i32
    return %c0_i32, %c0_i32_0 : i32, i32
  }
  func.func @transform_14(%arg0: i32) -> (i32, i32) {
    %c0_i32 = arith.constant 0 : i32
    %c0_i32_0 = arith.constant 0 : i32
    %c0_i32_1 = arith.constant 0 : i32
    return %c0_i32, %c0_i32_0 : i32, i32
  }
  func.func @transform_15(%arg0: i32) -> (i32, i32) {
    %c0_i32 = arith.constant 0 : i32
    %c0_i32_0 = arith.constant 0 : i32
    %c0_i32_1 = arith.constant 0 : i32
    return %c0_i32, %c0_i32_0 : i32, i32
  }
  func.func @transform_16(%arg0: i32) -> (i32, i32) {
    %c0_i32 = arith.constant 0 : i32
    %c0_i32_0 = arith.constant 0 : i32
    %c0_i32_1 = arith.constant 0 : i32
    return %c0_i32, %c0_i32_0 : i32, i32
  }
  func.func @transform_17(%arg0: i32) -> (i32, i32) {
    %c0_i32 = arith.constant 0 : i32
    %c0_i32_0 = arith.constant 0 : i32
    %c0_i32_1 = arith.constant 0 : i32
    return %c0_i32, %c0_i32_0 : i32, i32
  }
  func.func @transform_18(%arg0: i32) -> (i32, i32) {
    %c0_i32 = arith.constant 0 : i32
    %c0_i32_0 = arith.constant 0 : i32
    %c0_i32_1 = arith.constant 0 : i32
    return %c0_i32, %c0_i32_0 : i32, i32
  }
  func.func @transform_19(%arg0: i32) -> (i32, i32) {
    %c0_i32 = arith.constant 0 : i32
    %c0_i32_0 = arith.constant 0 : i32
    %c0_i32_1 = arith.constant 0 : i32
    return %c0_i32, %c0_i32_0 : i32, i32
  }
  func.func @transform_20(%arg0: i32) -> (i32, i32) {
    %c0_i32 = arith.constant 0 : i32
    %c0_i32_0 = arith.constant 0 : i32
    %c0_i32_1 = arith.constant 0 : i32
    return %c0_i32, %c0_i32_0 : i32, i32
  }
  func.func @transform_21(%arg0: i32) -> (i32, i32) {
    %c0_i32 = arith.constant 0 : i32
    %c0_i32_0 = arith.constant 0 : i32
    %c0_i32_1 = arith.constant 0 : i32
    return %c0_i32, %c0_i32_0 : i32, i32
  }
  func.func @transform_22(%arg0: i32) -> (i32, i32) {
    %c0_i32 = arith.constant 0 : i32
    %c0_i32_0 = arith.constant 0 : i32
    %c0_i32_1 = arith.constant 0 : i32
    return %c0_i32, %c0_i32_0 : i32, i32
  }
  func.func @transform_23(%arg0: i32) -> (i32, i32, i32) {
    %c0_i32 = arith.constant 0 : i32
    %c0_i32_0 = arith.constant 0 : i32
    %c0_i32_1 = arith.constant 0 : i32
    return %arg0, %c0_i32, %c0_i32_0 : i32, i32, i32
  }
}

</mosaic_0001>

<llo_original>
// kernel: tpu_custom_call.1
$region0: #{tpu_custom_call.1}
  #allocation0 [shape = 'u32[]', space=smem, size = 0x4, offset = 0x4, fixed_abs, tag = 'smem constant byte address 0x4 - core index']
  #allocation1 [shape = 'u32[72,128]{1,0:T(1,128)}', space=vmem, size = 0x9000, scoped, tag = 'internal scratch']
  #allocation2 [shape = 'f32[32,32]{1,0:T(8,128)}', space=vmem, size = 0x4000, scoped, tag = 'scratch operand']
  %s0 = inlined_call_operand.vmem [shape: bf16[2,16,32], index: 0, kind: input, shape index: {}]
  %s1 = inlined_call_operand.vmem [shape: bf16[32,32], index: 1, kind: input, shape index: {}]
  %s2 = inlined_call_operand.hbm [shape: f32[1,32], index: 2, kind: input, shape index: {}]
  %s3 = inlined_call_operand.hbm [shape: f32[1,32], index: 3, kind: input, shape index: {}]
  %s4 = inlined_call_operand.hbm [shape: f32[1,32], index: 4, kind: input, shape index: {}]
  %s5 = inlined_call_operand.hbm [shape: f32[1,32], index: 5, kind: input, shape index: {}]
  %s6 = inlined_call_operand.hbm [shape: f32[1,32], index: 6, kind: input, shape index: {}]
  %s7 = inlined_call_operand.vmem [shape: bf16[32,128], index: 7, kind: input, shape index: {}]
  %s8 = inlined_call_operand.hbm [shape: f32[1,128], index: 8, kind: input, shape index: {}]
  %s9 = inlined_call_operand.vmem [shape: f32[3,32], index: 9, kind: input, shape index: {}]
  %s10 = inlined_call_operand.hbm [shape: f32[1,32], index: 10, kind: input, shape index: {}]
  %s11 = inlined_call_operand.hbm [shape: f32[5,32], index: 11, kind: input, shape index: {}]
  %s12 = inlined_call_operand.hbm [shape: f32[1,32], index: 12, kind: input, shape index: {}]
  %s13 = inlined_call_operand.vmem [shape: bf16[32,32], index: 13, kind: input, shape index: {}]
  %s14 = inlined_call_operand.hbm [shape: f32[1,32], index: 14, kind: input, shape index: {}]
  %s15 = inlined_call_operand.vmem [shape: bf16[32,32], index: 15, kind: input, shape index: {}]
  %s16 = inlined_call_operand.hbm [shape: f32[1,32], index: 16, kind: input, shape index: {}]
  %s17 = inlined_call_operand.hbm [shape: f32[1,32], index: 17, kind: input, shape index: {}]
  %s18 = inlined_call_operand.hbm [shape: f32[1,32], index: 18, kind: input, shape index: {}]
  %s19 = inlined_call_operand.hbm [shape: bf16[32,128], index: 19, kind: input, shape index: {}]
  %s20 = inlined_call_operand.hbm [shape: f32[1,128], index: 20, kind: input, shape index: {}]
  %s21 = inlined_call_operand.vmem [shape: bf16[128,32], index: 21, kind: input, shape index: {}]
  %s22 = inlined_call_operand.vmem [shape: f32[1,32], index: 22, kind: input, shape index: {}]
  %s23 = inlined_call_operand.hbm [shape: bf16[2,16,32], index: 23, kind: output, shape index: {}]
  %s24 = sld [smem:[#allocation0]]
  $region189: #{tpu_custom_call.1} parent=0
    _
  %s26 = ssub.s32 1, %s24
  %s27 = scalar_select 0, %s26, %s24
  $region1: #{tpu_custom_call.1} parent=0
    #allocation3 [shape = 'u8[512]{0}', space=vmem, size = 0x400, scoped, tag = 'input window, operand 2, single buffered']
    #allocation4 [shape = 's32[2]{0}', space=sflag, size = 0x8, scoped, tag = 'scoped memory for tpu_custom_call.1']
    #allocation5 [shape = 's32[2]{0}', space=sflag, size = 0x8, scoped, tag = 'scoped memory for tpu_custom_call.1']
    #allocation6 [shape = 'u8[512]{0}', space=vmem, size = 0x400, scoped, tag = 'input window, operand 3, single buffered']
    #allocation7 [shape = 's32[1]{0}', space=sflag, size = 0x4, scoped, tag = 'scoped memory for tpu_custom_call.1']
    #allocation8 [shape = 'u8[512]{0}', space=vmem, size = 0x400, scoped, tag = 'input window, operand 4, single buffered']
    #allocation9 [shape = 'u8[512]{0}', space=vmem, size = 0x400, scoped, tag = 'input window, operand 5, single buffered']
    #allocation10 [shape = 's32[1]{0}', space=sflag, size = 0x4, scoped, tag = 'scoped memory for tpu_custom_call.1']
    #allocation11 [shape = 'u8[512]{0}', space=vmem, size = 0x400, scoped, tag = 'input window, operand 6, single buffered']
    #allocation12 [shape = 'u8[512]{0}', space=vmem, size = 0x400, scoped, tag = 'input window, operand 8, single buffered']
    #allocation13 [shape = 's32[1]{0}', space=sflag, size = 0x4, scoped, tag = 'scoped memory for tpu_custom_call.1']
    #allocation14 [shape = 'u8[512]{0}', space=vmem, size = 0x400, scoped, tag = 'input window, operand 10, single buffered']
    #allocation15 [shape = 'u8[4096]{0}', space=vmem, size = 0x1000, scoped, tag = 'input window, operand 11, single buffered']
    #allocation16 [shape = 's32[1]{0}', space=sflag, size = 0x4, scoped, tag = 'scoped memory for tpu_custom_call.1']
    #allocation17 [shape = 'u8[512]{0}', space=vmem, size = 0x400, scoped, tag = 'input window, operand 12, single buffered']
    #allocation18 [shape = 'u8[512]{0}', space=vmem, size = 0x400, scoped, tag = 'input window, operand 14, single buffered']
    #allocation19 [shape = 's32[1]{0}', space=sflag, size = 0x4, scoped, tag = 'scoped memory for tpu_custom_call.1']
    #allocation20 [shape = 'u8[512]{0}', space=vmem, size = 0x400, scoped, tag = 'input window, operand 16, single buffered']
    #allocation21 [shape = 'u8[512]{0}', space=vmem, size = 0x400, scoped, tag = 'input window, operand 17, single buffered']
    #allocation22 [shape = 's32[1]{0}', space=sflag, size = 0x4, scoped, tag = 'scoped memory for tpu_custom_call.1']
    #allocation23 [shape = 'u8[512]{0}', space=vmem, size = 0x400, scoped, tag = 'input window, operand 18, single buffered']
    #allocation24 [shape = 'u8[8192]{0}', space=vmem, size = 0x2000, scoped, tag = 'input window, operand 19, single buffered']
    #allocation25 [shape = 's32[1]{0}', space=sflag, size = 0x4, scoped, tag = 'scoped memory for tpu_custom_call.1']
    #allocation26 [shape = 'u8[512]{0}', space=vmem, size = 0x400, scoped, tag = 'input window, operand 20, single buffered']
    #allocation27 [shape = 'u8[8192]{0}', space=vmem, size = 0x2000, scoped, tag = 'output window, operand 0']
    %28 = vsyncpa [#allocation4], 0
    %29 = vsyncpa [#allocation7], 0
    %30 = vsyncpa [#allocation10], 0
    %31 = vsyncpa [#allocation13], 0
    %32 = vsyncpa [#allocation16], 0
    %33 = vsyncpa [#allocation19], 0
    %34 = vsyncpa [#allocation22], 0
    %35 = vsyncpa [#allocation25], 0
    %36 = vsyncpa [#allocation5], 0
    %s37 = scalar_lea.sflag [#allocation5], 1
    %38 = vsyncpa %s37, 0
    loop: start=0, step=1, limit=4
    $region2: #{tpu_custom_call.1} parent=1 // loop_pre_header
      _
    $region3: #{tpu_custom_call.1} parent=1 // loop_header
      %s40 = sphi 0, %s44
      %p41 = scmp.ge.s32.totalorder %s40, 4
      %s50 = sphi 0, %s52
      %s53 = sphi 0, %s50
      %s54 = sphi 0, %s53
      %s70 = sphi 0, %s54
      %s74 = sphi 0, %s74
      %s76 = sphi 0, %s74
      %s77 = sphi 0, %s76
      %s91 = sphi 0, %s77
      %s95 = sphi 0, %s95
      %s97 = sphi 0, %s95
      %s98 = sphi 0, %s97
      %s112 = sphi 0, %s98
      %s116 = sphi 0, %s116
      %s118 = sphi 0, %s116
      %s119 = sphi 0, %s118
      %s133 = sphi 0, %s119
      %s137 = sphi 0, %s137
      %s139 = sphi 0, %s137
      %s140 = sphi 0, %s139
      %s154 = sphi 0, %s140
      %s158 = sphi 0, %s158
      %s160 = sphi 0, %s158
      %s161 = sphi 0, %s160
      %s175 = sphi 0, %s161
      %s179 = sphi 0, %s179
      %s181 = sphi 0, %s179
      %s182 = sphi 0, %s181
      %s196 = sphi 0, %s182
      %s200 = sphi 0, %s200
      %s202 = sphi 0, %s200
      %s203 = sphi 0, %s202
      %s217 = sphi 0, %s203
      %s221 = sphi 0, %s221
      %s223 = sphi 0, %s221
      %s224 = sphi 0, %s223
      %s238 = sphi 0, %s224
      %s242 = sphi 0, %s242
      %s244 = sphi 0, %s242
      %s245 = sphi 0, %s244
      %s259 = sphi 0, %s245
      %s263 = sphi 0, %s263
      %s265 = sphi 0, %s263
      %s266 = sphi 0, %s265
      %s280 = sphi 0, %s266
      %s284 = sphi 0, %s284
      %s286 = sphi 0, %s284
      %s287 = sphi 0, %s286
      %s301 = sphi 0, %s287
      %s305 = sphi 0, %s305
      %s307 = sphi 0, %s305
      %s308 = sphi 0, %s307
      %s322 = sphi 0, %s308
      %s326 = sphi 0, %s326
      %s328 = sphi 0, %s326
      %s329 = sphi 0, %s328
      %s343 = sphi 0, %s329
      %s347 = sphi 0, %s347
      %s349 = sphi 0, %s347
      %s350 = sphi 0, %s349
      %s364 = sphi 0, %s350
      %s368 = sphi 0, %s368
      %s370 = sphi 0, %s368
      %s371 = sphi 0, %s370
      %s385 = sphi 0, %s371
      %s389 = sphi 0, %s389
      %s391 = sphi 0, %s389
      %s392 = sphi 0, %s391
      %s406 = sphi 0, %s392
      %s410 = sphi 0, %s410
      %s412 = sphi 0, %s410
      %s413 = sphi 0, %s412
      %s427 = sphi 0, %s413
      %s431 = sphi 0, %s431
      %s433 = sphi 0, %s431
      %s434 = sphi 0, %s433
      %s448 = sphi 0, %s434
      %s452 = sphi 0, %s452
      %s454 = sphi 0, %s452
      %s455 = sphi 0, %s454
      %s469 = sphi 0, %s455
      %s473 = sphi 0, %s473
      %s475 = sphi 0, %s473
      %s476 = sphi 0, %s475
      %s490 = sphi 0, %s476
      %s494 = sphi 0, %s494
      %s496 = sphi 0, %s494
      %s497 = sphi 0, %s496
      %s511 = sphi 0, %s497
      %s515 = sphi 0, %s515
      %s517 = sphi 0, %s515
      %s518 = sphi 0, %s517
      %s532 = sphi 0, %s518
      %s538 = sphi 0, %s540
      %s541 = sphi 0, %s538
      %s542 = sphi 0, %s541
      %s558 = sphi 0, %s542
    $region4: #{tpu_custom_call.1} parent=1 // loop_header_branch
      %43 = sbr.rel (%p41) target = $region8
    $region5: #{tpu_custom_call.1} parent=1 // loop_body
      %s45 = ssub.s32 %s40, 1
      %s46 = ssub.s32 %s40, 2
      %s47 = sadd.s32 %s40, 1
      %s48 = ssub.s32 %s40, %s47
      %p49 = scmp.eq.s32.totalorder %s48, 0
      %s51 = sadd.s32 %s50, 1
      %s52 = scalar_select %p49, %s50, %s51
      %p55 = pneg %p49
      %p56 = scmp.eq.s32.totalorder %s40, 1
      %p57 = por %p55, %p56
      %p58 = scmp.ne.s32.totalorder %s50, %s53
      %p59 = scmp.eq.s32.totalorder %s40, 0
      %p60 = por %p58, %p59
      %p61 = scmp.ne.s32.totalorder %s50, %s53
      %p62 = scmp.eq.s32.totalorder %s45, 1
      %p63 = por %p61, %p62
      %p64 = scmp.ne.s32.totalorder %s53, %s54
      %p65 = scmp.eq.s32.totalorder %s45, 0
      %p66 = por %p64, %p65
      %p67 = scmp.ne.s32.totalorder %s53, %s54
      %p68 = scmp.eq.s32.totalorder %s46, 1
      %p69 = por %p67, %p68
      %p71 = scmp.ne.s32.totalorder %s54, %s70
      %p72 = scmp.eq.s32.totalorder %s46, 0
      %p73 = por %p71, %p72
      %s75 = sadd.s32 %s74, 1
      %p78 = scmp.eq.s32.totalorder %s40, 1
      %p79 = scmp.ne.s32.totalorder %s74, %s76
      %p80 = scmp.eq.s32.totalorder %s40, 0
      %p81 = por %p79, %p80
      %p82 = scmp.ne.s32.totalorder %s74, %s76
      %p83 = scmp.eq.s32.totalorder %s45, 1
      %p84 = por %p82, %p83
      %p85 = scmp.ne.s32.totalorder %s76, %s77
      %p86 = scmp.eq.s32.totalorder %s45, 0
      %p87 = por %p85, %p86
      %p88 = scmp.ne.s32.totalorder %s76, %s77
      %p89 = scmp.eq.s32.totalorder %s46, 1
      %p90 = por %p88, %p89
      %p92 = scmp.ne.s32.totalorder %s77, %s91
      %p93 = scmp.eq.s32.totalorder %s46, 0
      %p94 = por %p92, %p93
      %s96 = sadd.s32 %s95, 1
      %p99 = scmp.eq.s32.totalorder %s40, 1
      %p100 = scmp.ne.s32.totalorder %s95, %s97
      %p101 = scmp.eq.s32.totalorder %s40, 0
      %p102 = por %p100, %p101
      %p103 = scmp.ne.s32.totalorder %s95, %s97
      %p104 = scmp.eq.s32.totalorder %s45, 1
      %p105 = por %p103, %p104
      %p106 = scmp.ne.s32.totalorder %s97, %s98
      %p107 = scmp.eq.s32.totalorder %s45, 0
      %p108 = por %p106, %p107
      %p109 = scmp.ne.s32.totalorder %s97, %s98
      %p110 = scmp.eq.s32.totalorder %s46, 1
      %p111 = por %p109, %p110
      %p113 = scmp.ne.s32.totalorder %s98, %s112
      %p114 = scmp.eq.s32.totalorder %s46, 0
      %p115 = por %p113, %p114
      %s117 = sadd.s32 %s116, 1
      %p120 = scmp.eq.s32.totalorder %s40, 1
      %p121 = scmp.ne.s32.totalorder %s116, %s118
      %p122 = scmp.eq.s32.totalorder %s40, 0
      %p123 = por %p121, %p122
      %p124 = scmp.ne.s32.totalorder %s116, %s118
      %p125 = scmp.eq.s32.totalorder %s45, 1
      %p126 = por %p124, %p125
      %p127 = scmp.ne.s32.totalorder %s118, %s119
      %p128 = scmp.eq.s32.totalorder %s45, 0
      %p129 = por %p127, %p128
      %p130 = scmp.ne.s32.totalorder %s118, %s119
      %p131 = scmp.eq.s32.totalorder %s46, 1
      %p132 = por %p130, %p131
      %p134 = scmp.ne.s32.totalorder %s119, %s133
      %p135 = scmp.eq.s32.totalorder %s46, 0
      %p136 = por %p134, %p135
      %s138 = sadd.s32 %s137, 1
      %p141 = scmp.eq.s32.totalorder %s40, 1
      %p142 = scmp.ne.s32.totalorder %s137, %s139
      %p143 = scmp.eq.s32.totalorder %s40, 0
      %p144 = por %p142, %p143
      %p145 = scmp.ne.s32.totalorder %s137, %s139
      %p146 = scmp.eq.s32.totalorder %s45, 1
      %p147 = por %p145, %p146
      %p148 = scmp.ne.s32.totalorder %s139, %s140
      %p149 = scmp.eq.s32.totalorder %s45, 0
      %p150 = por %p148, %p149
      %p151 = scmp.ne.s32.totalorder %s139, %s140
      %p152 = scmp.eq.s32.totalorder %s46, 1
      %p153 = por %p151, %p152
      %p155 = scmp.ne.s32.totalorder %s140, %s154
      %p156 = scmp.eq.s32.totalorder %s46, 0
      %p157 = por %p155, %p156
      %s159 = sadd.s32 %s158, 1
      %p162 = scmp.eq.s32.totalorder %s40, 1
      %p163 = scmp.ne.s32.totalorder %s158, %s160
      %p164 = scmp.eq.s32.totalorder %s40, 0
      %p165 = por %p163, %p164
      %p166 = scmp.ne.s32.totalorder %s158, %s160
      %p167 = scmp.eq.s32.totalorder %s45, 1
      %p168 = por %p166, %p167
      %p169 = scmp.ne.s32.totalorder %s160, %s161
      %p170 = scmp.eq.s32.totalorder %s45, 0
      %p171 = por %p169, %p170
      %p172 = scmp.ne.s32.totalorder %s160, %s161
      %p173 = scmp.eq.s32.totalorder %s46, 1
      %p174 = por %p172, %p173
      %p176 = scmp.ne.s32.totalorder %s161, %s175
      %p177 = scmp.eq.s32.totalorder %s46, 0
      %p178 = por %p176, %p177
      %s180 = sadd.s32 %s179, 1
      %p183 = scmp.eq.s32.totalorder %s40, 1
      %p184 = scmp.ne.s32.totalorder %s179, %s181
      %p185 = scmp.eq.s32.totalorder %s40, 0
      %p186 = por %p184, %p185
      %p187 = scmp.ne.s32.totalorder %s179, %s181
      %p188 = scmp.eq.s32.totalorder %s45, 1
      %p189 = por %p187, %p188
      %p190 = scmp.ne.s32.totalorder %s181, %s182
      %p191 = scmp.eq.s32.totalorder %s45, 0
      %p192 = por %p190, %p191
      %p193 = scmp.ne.s32.totalorder %s181, %s182
      %p194 = scmp.eq.s32.totalorder %s46, 1
      %p195 = por %p193, %p194
      %p197 = scmp.ne.s32.totalorder %s182, %s196
      %p198 = scmp.eq.s32.totalorder %s46, 0
      %p199 = por %p197, %p198
      %s201 = sadd.s32 %s200, 1
      %p204 = scmp.eq.s32.totalorder %s40, 1
      %p205 = scmp.ne.s32.totalorder %s200, %s202
      %p206 = scmp.eq.s32.totalorder %s40, 0
      %p207 = por %p205, %p206
      %p208 = scmp.ne.s32.totalorder %s200, %s202
      %p209 = scmp.eq.s32.totalorder %s45, 1
      %p210 = por %p208, %p209
      %p211 = scmp.ne.s32.totalorder %s202, %s203
      %p212 = scmp.eq.s32.totalorder %s45, 0
      %p213 = por %p211, %p212
      %p214 = scmp.ne.s32.totalorder %s202, %s203
      %p215 = scmp.eq.s32.totalorder %s46, 1
      %p216 = por %p214, %p215
      %p218 = scmp.ne.s32.totalorder %s203, %s217
      %p219 = scmp.eq.s32.totalorder %s46, 0
      %p220 = por %p218, %p219
      %s222 = sadd.s32 %s221, 1
      %p225 = scmp.eq.s32.totalorder %s40, 1
      %p226 = scmp.ne.s32.totalorder %s221, %s223
      %p227 = scmp.eq.s32.totalorder %s40, 0
      %p228 = por %p226, %p227
      %p229 = scmp.ne.s32.totalorder %s221, %s223
      %p230 = scmp.eq.s32.totalorder %s45, 1
      %p231 = por %p229, %p230
      %p232 = scmp.ne.s32.totalorder %s223, %s224
      %p233 = scmp.eq.s32.totalorder %s45, 0
      %p234 = por %p232, %p233
      %p235 = scmp.ne.s32.totalorder %s223, %s224
      %p236 = scmp.eq.s32.totalorder %s46, 1
      %p237 = por %p235, %p236
      %p239 = scmp.ne.s32.totalorder %s224, %s238
      %p240 = scmp.eq.s32.totalorder %s46, 0
      %p241 = por %p239, %p240
      %s243 = sadd.s32 %s242, 1
      %p246 = scmp.eq.s32.totalorder %s40, 1
      %p247 = scmp.ne.s32.totalorder %s242, %s244
      %p248 = scmp.eq.s32.totalorder %s40, 0
      %p249 = por %p247, %p248
      %p250 = scmp.ne.s32.totalorder %s242, %s244
      %p251 = scmp.eq.s32.totalorder %s45, 1
      %p252 = por %p250, %p251
      %p253 = scmp.ne.s32.totalorder %s244, %s245
      %p254 = scmp.eq.s32.totalorder %s45, 0
      %p255 = por %p253, %p254
      %p256 = scmp.ne.s32.totalorder %s244, %s245
      %p257 = scmp.eq.s32.totalorder %s46, 1
      %p258 = por %p256, %p257
      %p260 = scmp.ne.s32.totalorder %s245, %s259
      %p261 = scmp.eq.s32.totalorder %s46, 0
      %p262 = por %p260, %p261
      %s264 = sadd.s32 %s263, 1
      %p267 = scmp.eq.s32.totalorder %s40, 1
      %p268 = scmp.ne.s32.totalorder %s263, %s265
      %p269 = scmp.eq.s32.totalorder %s40, 0
      %p270 = por %p268, %p269
      %p271 = scmp.ne.s32.totalorder %s263, %s265
      %p272 = scmp.eq.s32.totalorder %s45, 1
      %p273 = por %p271, %p272
      %p274 = scmp.ne.s32.totalorder %s265, %s266
      %p275 = scmp.eq.s32.totalorder %s45, 0
      %p276 = por %p274, %p275
      %p277 = scmp.ne.s32.totalorder %s265, %s266
      %p278 = scmp.eq.s32.totalorder %s46, 1
      %p279 = por %p277, %p278
      %p281 = scmp.ne.s32.totalorder %s266, %s280
      %p282 = scmp.eq.s32.totalorder %s46, 0
      %p283 = por %p281, %p282
      %s285 = sadd.s32 %s284, 1
      %p288 = scmp.eq.s32.totalorder %s40, 1
      %p289 = scmp.ne.s32.totalorder %s284, %s286
      %p290 = scmp.eq.s32.totalorder %s40, 0
      %p291 = por %p289, %p290
      %p292 = scmp.ne.s32.totalorder %s284, %s286
      %p293 = scmp.eq.s32.totalorder %s45, 1
      %p294 = por %p292, %p293
      %p295 = scmp.ne.s32.totalorder %s286, %s287
      %p296 = scmp.eq.s32.totalorder %s45, 0
      %p297 = por %p295, %p296
      %p298 = scmp.ne.s32.totalorder %s286, %s287
      %p299 = scmp.eq.s32.totalorder %s46, 1
      %p300 = por %p298, %p299
      %p302 = scmp.ne.s32.totalorder %s287, %s301
      %p303 = scmp.eq.s32.totalorder %s46, 0
      %p304 = por %p302, %p303
      %s306 = sadd.s32 %s305, 1
      %p309 = scmp.eq.s32.totalorder %s40, 1
      %p310 = scmp.ne.s32.totalorder %s305, %s307
      %p311 = scmp.eq.s32.totalorder %s40, 0
      %p312 = por %p310, %p311
      %p313 = scmp.ne.s32.totalorder %s305, %s307
      %p314 = scmp.eq.s32.totalorder %s45, 1
      %p315 = por %p313, %p314
      %p316 = scmp.ne.s32.totalorder %s307, %s308
      %p317 = scmp.eq.s32.totalorder %s45, 0
      %p318 = por %p316, %p317
      %p319 = scmp.ne.s32.totalorder %s307, %s308
      %p320 = scmp.eq.s32.totalorder %s46, 1
      %p321 = por %p319, %p320
      %p323 = scmp.ne.s32.totalorder %s308, %s322
      %p324 = scmp.eq.s32.totalorder %s46, 0
      %p325 = por %p323, %p324
      %s327 = sadd.s32 %s326, 1
      %p330 = scmp.eq.s32.totalorder %s40, 1
      %p331 = scmp.ne.s32.totalorder %s326, %s328
      %p332 = scmp.eq.s32.totalorder %s40, 0
      %p333 = por %p331, %p332
      %p334 = scmp.ne.s32.totalorder %s326, %s328
      %p335 = scmp.eq.s32.totalorder %s45, 1
      %p336 = por %p334, %p335
      %p337 = scmp.ne.s32.totalorder %s328, %s329
      %p338 = scmp.eq.s32.totalorder %s45, 0
      %p339 = por %p337, %p338
      %p340 = scmp.ne.s32.totalorder %s328, %s329
      %p341 = scmp.eq.s32.totalorder %s46, 1
      %p342 = por %p340, %p341
      %p344 = scmp.ne.s32.totalorder %s329, %s343
      %p345 = scmp.eq.s32.totalorder %s46, 0
      %p346 = por %p344, %p345
      %s348 = sadd.s32 %s347, 1
      %p351 = scmp.eq.s32.totalorder %s40, 1
      %p352 = scmp.ne.s32.totalorder %s347, %s349
      %p353 = scmp.eq.s32.totalorder %s40, 0
      %p354 = por %p352, %p353
      %p355 = scmp.ne.s32.totalorder %s347, %s349
      %p356 = scmp.eq.s32.totalorder %s45, 1
      %p357 = por %p355, %p356
      %p358 = scmp.ne.s32.totalorder %s349, %s350
      %p359 = scmp.eq.s32.totalorder %s45, 0
      %p360 = por %p358, %p359
      %p361 = scmp.ne.s32.totalorder %s349, %s350
      %p362 = scmp.eq.s32.totalorder %s46, 1
      %p363 = por %p361, %p362
      %p365 = scmp.ne.s32.totalorder %s350, %s364
      %p366 = scmp.eq.s32.totalorder %s46, 0
      %p367 = por %p365, %p366
      %s369 = sadd.s32 %s368, 1
      %p372 = scmp.eq.s32.totalorder %s40, 1
      %p373 = scmp.ne.s32.totalorder %s368, %s370
      %p374 = scmp.eq.s32.totalorder %s40, 0
      %p375 = por %p373, %p374
      %p376 = scmp.ne.s32.totalorder %s368, %s370
      %p377 = scmp.eq.s32.totalorder %s45, 1
      %p378 = por %p376, %p377
      %p379 = scmp.ne.s32.totalorder %s370, %s371
      %p380 = scmp.eq.s32.totalorder %s45, 0
      %p381 = por %p379, %p380
      %p382 = scmp.ne.s32.totalorder %s370, %s371
      %p383 = scmp.eq.s32.totalorder %s46, 1
      %p384 = por %p382, %p383
      %p386 = scmp.ne.s32.totalorder %s371, %s385
      %p387 = scmp.eq.s32.totalorder %s46, 0
      %p388 = por %p386, %p387
      %s390 = sadd.s32 %s389, 1
      %p393 = scmp.eq.s32.totalorder %s40, 1
      %p394 = scmp.ne.s32.totalorder %s389, %s391
      %p395 = scmp.eq.s32.totalorder %s40, 0
      %p396 = por %p394, %p395
      %p397 = scmp.ne.s32.totalorder %s389, %s391
      %p398 = scmp.eq.s32.totalorder %s45, 1
      %p399 = por %p397, %p398
      %p400 = scmp.ne.s32.totalorder %s391, %s392
      %p401 = scmp.eq.s32.totalorder %s45, 0
      %p402 = por %p400, %p401
      %p403 = scmp.ne.s32.totalorder %s391, %s392
      %p404 = scmp.eq.s32.totalorder %s46, 1
      %p405 = por %p403, %p404
      %p407 = scmp.ne.s32.totalorder %s392, %s406
      %p408 = scmp.eq.s32.totalorder %s46, 0
      %p409 = por %p407, %p408
      %s411 = sadd.s32 %s410, 1
      %p414 = scmp.eq.s32.totalorder %s40, 1
      %p415 = scmp.ne.s32.totalorder %s410, %s412
      %p416 = scmp.eq.s32.totalorder %s40, 0
      %p417 = por %p415, %p416
      %p418 = scmp.ne.s32.totalorder %s410, %s412
      %p419 = scmp.eq.s32.totalorder %s45, 1
      %p420 = por %p418, %p419
      %p421 = scmp.ne.s32.totalorder %s412, %s413
      %p422 = scmp.eq.s32.totalorder %s45, 0
      %p423 = por %p421, %p422
      %p424 = scmp.ne.s32.totalorder %s412, %s413
      %p425 = scmp.eq.s32.totalorder %s46, 1
      %p426 = por %p424, %p425
      %p428 = scmp.ne.s32.totalorder %s413, %s427
      %p429 = scmp.eq.s32.totalorder %s46, 0
      %p430 = por %p428, %p429
      %s432 = sadd.s32 %s431, 1
      %p435 = scmp.eq.s32.totalorder %s40, 1
      %p436 = scmp.ne.s32.totalorder %s431, %s433
      %p437 = scmp.eq.s32.totalorder %s40, 0
      %p438 = por %p436, %p437
      %p439 = scmp.ne.s32.totalorder %s431, %s433
      %p440 = scmp.eq.s32.totalorder %s45, 1
      %p441 = por %p439, %p440
      %p442 = scmp.ne.s32.totalorder %s433, %s434
      %p443 = scmp.eq.s32.totalorder %s45, 0
      %p444 = por %p442, %p443
      %p445 = scmp.ne.s32.totalorder %s433, %s434
      %p446 = scmp.eq.s32.totalorder %s46, 1
      %p447 = por %p445, %p446
      %p449 = scmp.ne.s32.totalorder %s434, %s448
      %p450 = scmp.eq.s32.totalorder %s46, 0
      %p451 = por %p449, %p450
      %s453 = sadd.s32 %s452, 1
      %p456 = scmp.eq.s32.totalorder %s40, 1
      %p457 = scmp.ne.s32.totalorder %s452, %s454
      %p458 = scmp.eq.s32.totalorder %s40, 0
      %p459 = por %p457, %p458
      %p460 = scmp.ne.s32.totalorder %s452, %s454
      %p461 = scmp.eq.s32.totalorder %s45, 1
      %p462 = por %p460, %p461
      %p463 = scmp.ne.s32.totalorder %s454, %s455
      %p464 = scmp.eq.s32.totalorder %s45, 0
      %p465 = por %p463, %p464
      %p466 = scmp.ne.s32.totalorder %s454, %s455
      %p467 = scmp.eq.s32.totalorder %s46, 1
      %p468 = por %p466, %p467
      %p470 = scmp.ne.s32.totalorder %s455, %s469
      %p471 = scmp.eq.s32.totalorder %s46, 0
      %p472 = por %p470, %p471
      %s474 = sadd.s32 %s473, 1
      %p477 = scmp.eq.s32.totalorder %s40, 1
      %p478 = scmp.ne.s32.totalorder %s473, %s475
      %p479 = scmp.eq.s32.totalorder %s40, 0
      %p480 = por %p478, %p479
      %p481 = scmp.ne.s32.totalorder %s473, %s475
      %p482 = scmp.eq.s32.totalorder %s45, 1
      %p483 = por %p481, %p482
      %p484 = scmp.ne.s32.totalorder %s475, %s476
      %p485 = scmp.eq.s32.totalorder %s45, 0
      %p486 = por %p484, %p485
      %p487 = scmp.ne.s32.totalorder %s475, %s476
      %p488 = scmp.eq.s32.totalorder %s46, 1
      %p489 = por %p487, %p488
      %p491 = scmp.ne.s32.totalorder %s476, %s490
      %p492 = scmp.eq.s32.totalorder %s46, 0
      %p493 = por %p491, %p492
      %s495 = sadd.s32 %s494, 1
      %p498 = scmp.eq.s32.totalorder %s40, 1
      %p499 = scmp.ne.s32.totalorder %s494, %s496
      %p500 = scmp.eq.s32.totalorder %s40, 0
      %p501 = por %p499, %p500
      %p502 = scmp.ne.s32.totalorder %s494, %s496
      %p503 = scmp.eq.s32.totalorder %s45, 1
      %p504 = por %p502, %p503
      %p505 = scmp.ne.s32.totalorder %s496, %s497
      %p506 = scmp.eq.s32.totalorder %s45, 0
      %p507 = por %p505, %p506
      %p508 = scmp.ne.s32.totalorder %s496, %s497
      %p509 = scmp.eq.s32.totalorder %s46, 1
      %p510 = por %p508, %p509
      %p512 = scmp.ne.s32.totalorder %s497, %s511
      %p513 = scmp.eq.s32.totalorder %s46, 0
      %p514 = por %p512, %p513
      %s516 = sadd.s32 %s515, 1
      %p519 = scmp.eq.s32.totalorder %s40, 1
      %p520 = scmp.ne.s32.totalorder %s515, %s517
      %p521 = scmp.eq.s32.totalorder %s40, 0
      %p522 = por %p520, %p521
      %p523 = scmp.ne.s32.totalorder %s515, %s517
      %p524 = scmp.eq.s32.totalorder %s45, 1
      %p525 = por %p523, %p524
      %p526 = scmp.ne.s32.totalorder %s517, %s518
      %p527 = scmp.eq.s32.totalorder %s45, 0
      %p528 = por %p526, %p527
      %p529 = scmp.ne.s32.totalorder %s517, %s518
      %p530 = scmp.eq.s32.totalorder %s46, 1
      %p531 = por %p529, %p530
      %p533 = scmp.ne.s32.totalorder %s518, %s532
      %p534 = scmp.eq.s32.totalorder %s46, 0
      %p535 = por %p533, %p534
      %s536 = ssub.s32 %s40, %s47
      %p537 = scmp.eq.s32.totalorder %s536, 0
      %s539 = sadd.s32 %s538, 1
      %s540 = scalar_select %p537, %s538, %s539
      %p543 = pneg %p537
      %p544 = scmp.eq.s32.totalorder %s40, 1
      %p545 = por %p543, %p544
      %p546 = scmp.ne.s32.totalorder %s538, %s541
      %p547 = scmp.eq.s32.totalorder %s40, 0
      %p548 = por %p546, %p547
      %p549 = scmp.ne.s32.totalorder %s538, %s541
      %p550 = scmp.eq.s32.totalorder %s45, 1
      %p551 = por %p549, %p550
      %p552 = scmp.ne.s32.totalorder %s541, %s542
      %p553 = scmp.eq.s32.totalorder %s45, 0
      %p554 = por %p552, %p553
      %p555 = scmp.ne.s32.totalorder %s541, %s542
      %p556 = scmp.eq.s32.totalorder %s46, 1
      %p557 = por %p555, %p556
      %p559 = scmp.ne.s32.totalorder %s542, %s558
      %p560 = scmp.eq.s32.totalorder %s46, 0
      %p561 = por %p559, %p560
      %p562 = scmp.le.s32.totalorder 1, %s40
      %p563 = scmp.lt.s32.totalorder %s40, 3
      %p564 = pnand %p562, %p563
      %p565 = pneg %p564
      // Predicated region
      $region9: #{tpu_custom_call.1} parent=5 // pred_check
        _
      $region10: #{tpu_custom_call.1} parent=5 // pred_check_branch
        %567 = sbr.rel (%p564) target = $region12
      $region11: #{tpu_custom_call.1} parent=5 // pred_region
        %s568 = ssub.s32 %s40, 1
        // Predicated region
        $region13: #{tpu_custom_call.1} parent=11 // pred_check
          %p569 = pneg %p87
        $region14: #{tpu_custom_call.1} parent=11 // pred_check_branch
          %571 = sbr.rel (%p569) target = $region16
        $region15: #{tpu_custom_call.1} parent=11 // pred_region
          _
        $region16: #{tpu_custom_call.1} parent=11 // pred_fallthru
          _
        // Predicated region
        $region17: #{tpu_custom_call.1} parent=11 // pred_check
          %p572 = pneg %p108
        $region18: #{tpu_custom_call.1} parent=11 // pred_check_branch
          %574 = sbr.rel (%p572) target = $region20
        $region19: #{tpu_custom_call.1} parent=11 // pred_region
          %576 = vsyncadd [#allocation4], 0
          %s578 = sshll.u32 %s2, 4
          %s579 = int_to_ptr.hbm [resolvable:$true] %s578
          %s580 = sshll.u32 [#allocation3], 4
          %s581 = int_to_ptr.vmem [resolvable:$true] %s580
          %583 = dma.hbm_to_vmem [thread:$0]  %s579, 16, %s581, [#allocation4]
        $region20: #{tpu_custom_call.1} parent=11 // pred_fallthru
          _
        // Predicated region
        $region21: #{tpu_custom_call.1} parent=11 // pred_check
          %p584 = pneg %p129
        $region22: #{tpu_custom_call.1} parent=11 // pred_check_branch
          %586 = sbr.rel (%p584) target = $region24
        $region23: #{tpu_custom_call.1} parent=11 // pred_region
          %588 = vsyncadd [#allocation7], 0
          %s590 = sshll.u32 %s3, 4
          %s591 = int_to_ptr.hbm [resolvable:$true] %s590
          %s592 = sshll.u32 [#allocation6], 4
          %s593 = int_to_ptr.vmem [resolvable:$true] %s592
          %595 = dma.hbm_to_vmem [thread:$0]  %s591, 16, %s593, [#allocation7]
        $region24: #{tpu_custom_call.1} parent=11 // pred_fallthru
          _
        // Predicated region
        $region25: #{tpu_custom_call.1} parent=11 // pred_check
          %p596 = pneg %p150
        $region26: #{tpu_custom_call.1} parent=11 // pred_check_branch
          %598 = sbr.rel (%p596) target = $region28
        $region27: #{tpu_custom_call.1} parent=11 // pred_region
          %600 = vsyncadd [#allocation7], 0
          %s602 = sshll.u32 %s4, 4
          %s603 = int_to_ptr.hbm [resolvable:$true] %s602
          %s604 = sshll.u32 [#allocation8], 4
          %s605 = int_to_ptr.vmem [resolvable:$true] %s604
          %607 = dma.hbm_to_vmem [thread:$0]  %s603, 16, %s605, [#allocation7]
        $region28: #{tpu_custom_call.1} parent=11 // pred_fallthru
          _
        // Predicated region
        $region29: #{tpu_custom_call.1} parent=11 // pred_check
          %p608 = pneg %p171
        $region30: #{tpu_custom_call.1} parent=11 // pred_check_branch
          %610 = sbr.rel (%p608) target = $region32
        $region31: #{tpu_custom_call.1} parent=11 // pred_region
          %612 = vsyncadd [#allocation10], 0
          %s614 = sshll.u32 %s5, 4
          %s615 = int_to_ptr.hbm [resolvable:$true] %s614
          %s616 = sshll.u32 [#allocation9], 4
          %s617 = int_to_ptr.vmem [resolvable:$true] %s616
          %619 = dma.hbm_to_vmem [thread:$0]  %s615, 16, %s617, [#allocation10]
        $region32: #{tpu_custom_call.1} parent=11 // pred_fallthru
          _
        // Predicated region
        $region33: #{tpu_custom_call.1} parent=11 // pred_check
          %p620 = pneg %p192
        $region34: #{tpu_custom_call.1} parent=11 // pred_check_branch
          %622 = sbr.rel (%p620) target = $region36
        $region35: #{tpu_custom_call.1} parent=11 // pred_region
          %624 = vsyncadd [#allocation10], 0
          %s626 = sshll.u32 %s6, 4
          %s627 = int_to_ptr.hbm [resolvable:$true] %s626
          %s628 = sshll.u32 [#allocation11], 4
          %s629 = int_to_ptr.vmem [resolvable:$true] %s628
          %631 = dma.hbm_to_vmem [thread:$0]  %s627, 16, %s629, [#allocation10]
        $region36: #{tpu_custom_call.1} parent=11 // pred_fallthru
          _
        // Predicated region
        $region37: #{tpu_custom_call.1} parent=11 // pred_check
          %p632 = pneg %p213
        $region38: #{tpu_custom_call.1} parent=11 // pred_check_branch
          %634 = sbr.rel (%p632) target = $region40
        $region39: #{tpu_custom_call.1} parent=11 // pred_region
          _
        $region40: #{tpu_custom_call.1} parent=11 // pred_fallthru
          _
        // Predicated region
        $region41: #{tpu_custom_call.1} parent=11 // pred_check
          %p635 = pneg %p234
        $region42: #{tpu_custom_call.1} parent=11 // pred_check_branch
          %637 = sbr.rel (%p635) target = $region44
        $region43: #{tpu_custom_call.1} parent=11 // pred_region
          %639 = vsyncadd [#allocation13], 0
          %s641 = sshll.u32 %s8, 4
          %s642 = int_to_ptr.hbm [resolvable:$true] %s641
          %s643 = sshll.u32 [#allocation12], 4
          %s644 = int_to_ptr.vmem [resolvable:$true] %s643
          %646 = dma.hbm_to_vmem [thread:$0]  %s642, 16, %s644, [#allocation13]
        $region44: #{tpu_custom_call.1} parent=11 // pred_fallthru
          _
        // Predicated region
        $region45: #{tpu_custom_call.1} parent=11 // pred_check
          %p647 = pneg %p255
        $region46: #{tpu_custom_call.1} parent=11 // pred_check_branch
          %649 = sbr.rel (%p647) target = $region48
        $region47: #{tpu_custom_call.1} parent=11 // pred_region
          _
        $region48: #{tpu_custom_call.1} parent=11 // pred_fallthru
          _
        // Predicated region
        $region49: #{tpu_custom_call.1} parent=11 // pred_check
          %p650 = pneg %p276
        $region50: #{tpu_custom_call.1} parent=11 // pred_check_branch
          %652 = sbr.rel (%p650) target = $region52
        $region51: #{tpu_custom_call.1} parent=11 // pred_region
          %654 = vsyncadd [#allocation13], 0
          %s656 = sshll.u32 %s10, 4
          %s657 = int_to_ptr.hbm [resolvable:$true] %s656
          %s658 = sshll.u32 [#allocation14], 4
          %s659 = int_to_ptr.vmem [resolvable:$true] %s658
          %661 = dma.hbm_to_vmem [thread:$0]  %s657, 16, %s659, [#allocation13]
        $region52: #{tpu_custom_call.1} parent=11 // pred_fallthru
          _
        // Predicated region
        $region53: #{tpu_custom_call.1} parent=11 // pred_check
          %p662 = pneg %p297
        $region54: #{tpu_custom_call.1} parent=11 // pred_check_branch
          %664 = sbr.rel (%p662) target = $region56
        $region55: #{tpu_custom_call.1} parent=11 // pred_region
          %666 = vsyncadd [#allocation16], 0
          %s668 = sshll.u32 %s11, 4
          %s669 = int_to_ptr.hbm [resolvable:$true] %s668
          %s670 = sshll.u32 [#allocation15], 4
          %s671 = int_to_ptr.vmem [resolvable:$true] %s670
          %673 = dma.hbm_to_vmem [thread:$0]  %s669, 128, %s671, [#allocation16]
        $region56: #{tpu_custom_call.1} parent=11 // pred_fallthru
          _
        // Predicated region
        $region57: #{tpu_custom_call.1} parent=11 // pred_check
          %p674 = pneg %p318
        $region58: #{tpu_custom_call.1} parent=11 // pred_check_branch
          %676 = sbr.rel (%p674) target = $region60
        $region59: #{tpu_custom_call.1} parent=11 // pred_region
          %678 = vsyncadd [#allocation16], 0
          %s680 = sshll.u32 %s12, 4
          %s681 = int_to_ptr.hbm [resolvable:$true] %s680
          %s682 = sshll.u32 [#allocation17], 4
          %s683 = int_to_ptr.vmem [resolvable:$true] %s682
          %685 = dma.hbm_to_vmem [thread:$0]  %s681, 16, %s683, [#allocation16]
        $region60: #{tpu_custom_call.1} parent=11 // pred_fallthru
          _
        // Predicated region
        $region61: #{tpu_custom_call.1} parent=11 // pred_check
          %p686 = pneg %p339
        $region62: #{tpu_custom_call.1} parent=11 // pred_check_branch
          %688 = sbr.rel (%p686) target = $region64
        $region63: #{tpu_custom_call.1} parent=11 // pred_region
          _
        $region64: #{tpu_custom_call.1} parent=11 // pred_fallthru
          _
        // Predicated region
        $region65: #{tpu_custom_call.1} parent=11 // pred_check
          %p689 = pneg %p360
        $region66: #{tpu_custom_call.1} parent=11 // pred_check_branch
          %691 = sbr.rel (%p689) target = $region68
        $region67: #{tpu_custom_call.1} parent=11 // pred_region
          %693 = vsyncadd [#allocation19], 0
          %s695 = sshll.u32 %s14, 4
          %s696 = int_to_ptr.hbm [resolvable:$true] %s695
          %s697 = sshll.u32 [#allocation18], 4
          %s698 = int_to_ptr.vmem [resolvable:$true] %s697
          %700 = dma.hbm_to_vmem [thread:$0]  %s696, 16, %s698, [#allocation19]
        $region68: #{tpu_custom_call.1} parent=11 // pred_fallthru
          _
        // Predicated region
        $region69: #{tpu_custom_call.1} parent=11 // pred_check
          %p701 = pneg %p381
        $region70: #{tpu_custom_call.1} parent=11 // pred_check_branch
          %703 = sbr.rel (%p701) target = $region72
        $region71: #{tpu_custom_call.1} parent=11 // pred_region
          _
        $region72: #{tpu_custom_call.1} parent=11 // pred_fallthru
          _
        // Predicated region
        $region73: #{tpu_custom_call.1} parent=11 // pred_check
          %p704 = pneg %p402
        $region74: #{tpu_custom_call.1} parent=11 // pred_check_branch
          %706 = sbr.rel (%p704) target = $region76
        $region75: #{tpu_custom_call.1} parent=11 // pred_region
          %708 = vsyncadd [#allocation19], 0
          %s710 = sshll.u32 %s16, 4
          %s711 = int_to_ptr.hbm [resolvable:$true] %s710
          %s712 = sshll.u32 [#allocation20], 4
          %s713 = int_to_ptr.vmem [resolvable:$true] %s712
          %715 = dma.hbm_to_vmem [thread:$0]  %s711, 16, %s713, [#allocation19]
        $region76: #{tpu_custom_call.1} parent=11 // pred_fallthru
          _
        // Predicated region
        $region77: #{tpu_custom_call.1} parent=11 // pred_check
          %p716 = pneg %p423
        $region78: #{tpu_custom_call.1} parent=11 // pred_check_branch
          %718 = sbr.rel (%p716) target = $region80
        $region79: #{tpu_custom_call.1} parent=11 // pred_region
          %720 = vsyncadd [#allocation22], 0
          %s722 = sshll.u32 %s17, 4
          %s723 = int_to_ptr.hbm [resolvable:$true] %s722
          %s724 = sshll.u32 [#allocation21], 4
          %s725 = int_to_ptr.vmem [resolvable:$true] %s724
          %727 = dma.hbm_to_vmem [thread:$0]  %s723, 16, %s725, [#allocation22]
        $region80: #{tpu_custom_call.1} parent=11 // pred_fallthru
          _
        // Predicated region
        $region81: #{tpu_custom_call.1} parent=11 // pred_check
          %p728 = pneg %p444
        $region82: #{tpu_custom_call.1} parent=11 // pred_check_branch
          %730 = sbr.rel (%p728) target = $region84
        $region83: #{tpu_custom_call.1} parent=11 // pred_region
          %732 = vsyncadd [#allocation22], 0
          %s734 = sshll.u32 %s18, 4
          %s735 = int_to_ptr.hbm [resolvable:$true] %s734
          %s736 = sshll.u32 [#allocation23], 4
          %s737 = int_to_ptr.vmem [resolvable:$true] %s736
          %739 = dma.hbm_to_vmem [thread:$0]  %s735, 16, %s737, [#allocation22]
        $region84: #{tpu_custom_call.1} parent=11 // pred_fallthru
          _
        // Predicated region
        $region85: #{tpu_custom_call.1} parent=11 // pred_check
          %p740 = pneg %p465
        $region86: #{tpu_custom_call.1} parent=11 // pred_check_branch
          %742 = sbr.rel (%p740) target = $region88
        $region87: #{tpu_custom_call.1} parent=11 // pred_region
          %744 = vsyncadd [#allocation25], 0
          %s745 = sshll.u32 %s19, 4
          %s746 = int_to_ptr.hbm [resolvable:$true] %s745
          %s747 = sshll.u32 [#allocation24], 4
          %s748 = int_to_ptr.vmem [resolvable:$true] %s747
          %753 = dma.hbm_to_vmem [thread:$0]  %s746, 256, %s748, [#allocation25], 64, 64, 4
        $region88: #{tpu_custom_call.1} parent=11 // pred_fallthru
          _
        // Predicated region
        $region89: #{tpu_custom_call.1} parent=11 // pred_check
          %p754 = pneg %p486
        $region90: #{tpu_custom_call.1} parent=11 // pred_check_branch
          %756 = sbr.rel (%p754) target = $region92
        $region91: #{tpu_custom_call.1} parent=11 // pred_region
          %758 = vsyncadd [#allocation25], 0
          %s760 = sshll.u32 %s20, 4
          %s761 = int_to_ptr.hbm [resolvable:$true] %s760
          %s762 = sshll.u32 [#allocation26], 4
          %s763 = int_to_ptr.vmem [resolvable:$true] %s762
          %765 = dma.hbm_to_vmem [thread:$0]  %s761, 16, %s763, [#allocation25]
        $region92: #{tpu_custom_call.1} parent=11 // pred_fallthru
          _
        // Predicated region
        $region93: #{tpu_custom_call.1} parent=11 // pred_check
          %p766 = pneg %p507
        $region94: #{tpu_custom_call.1} parent=11 // pred_check_branch
          %768 = sbr.rel (%p766) target = $region96
        $region95: #{tpu_custom_call.1} parent=11 // pred_region
          _
        $region96: #{tpu_custom_call.1} parent=11 // pred_fallthru
          _
        // Predicated region
        $region97: #{tpu_custom_call.1} parent=11 // pred_check
          %p769 = pneg %p528
        $region98: #{tpu_custom_call.1} parent=11 // pred_check_branch
          %771 = sbr.rel (%p769) target = $region100
        $region99: #{tpu_custom_call.1} parent=11 // pred_region
          _
        $region100: #{tpu_custom_call.1} parent=11 // pred_fallthru
          _
      $region12: #{tpu_custom_call.1} parent=5 // pred_fallthru
        _
      %p772 = scmp.lt.s32.totalorder %s40, 2
      // Predicated region
      $region101: #{tpu_custom_call.1} parent=5 // pred_check
        %p773 = pneg %p772
      $region102: #{tpu_custom_call.1} parent=5 // pred_check_branch
        %775 = sbr.rel (%p773) target = $region104
      $region103: #{tpu_custom_call.1} parent=5 // pred_region
        // Predicated region
        $region105: #{tpu_custom_call.1} parent=103 // pred_check
          %p776 = pneg %p60
        $region106: #{tpu_custom_call.1} parent=103 // pred_check_branch
          %778 = sbr.rel (%p776) target = $region108
        $region107: #{tpu_custom_call.1} parent=103 // pred_region
          %p779 = scmp.lt.s32.totalorder %s40, 1
          %s780 = scalar_select %p779, %s40, 1
          %s781 = smul.addr %s780, 2
          %s782 = smul.addr %s781, 4
          %s783 = scalar_lea.vmem %s0, %s782
        $region108: #{tpu_custom_call.1} parent=103 // pred_fallthru
          _
      $region104: #{tpu_custom_call.1} parent=5 // pred_fallthru
        _
      %p784 = scmp.le.s32.totalorder 1, %s40
      %p785 = scmp.lt.s32.totalorder %s40, 3
      %p786 = pnand %p784, %p785
      %p787 = pneg %p786
      // Predicated region
      $region109: #{tpu_custom_call.1} parent=5 // pred_check
        _
      $region110: #{tpu_custom_call.1} parent=5 // pred_check_branch
        %789 = sbr.rel (%p786) target = $region112
      $region111: #{tpu_custom_call.1} parent=5 // pred_region
        %s790 = ssub.s32 %s40, 1
        // Predicated region
        $region113: #{tpu_custom_call.1} parent=111 // pred_check
          %p791 = pneg %p108
        $region114: #{tpu_custom_call.1} parent=111 // pred_check_branch
          %793 = sbr.rel (%p791) target = $region116
        $region115: #{tpu_custom_call.1} parent=111 // pred_region
          %795 = dma.done [#allocation4], 16
        $region116: #{tpu_custom_call.1} parent=111 // pred_fallthru
          _
        // Predicated region
        $region117: #{tpu_custom_call.1} parent=111 // pred_check
          %p796 = pneg %p129
        $region118: #{tpu_custom_call.1} parent=111 // pred_check_branch
          %798 = sbr.rel (%p796) target = $region120
        $region119: #{tpu_custom_call.1} parent=111 // pred_region
          %800 = dma.done [#allocation7], 16
        $region120: #{tpu_custom_call.1} parent=111 // pred_fallthru
          _
        // Predicated region
        $region121: #{tpu_custom_call.1} parent=111 // pred_check
          %p801 = pneg %p150
        $region122: #{tpu_custom_call.1} parent=111 // pred_check_branch
          %803 = sbr.rel (%p801) target = $region124
        $region123: #{tpu_custom_call.1} parent=111 // pred_region
          %805 = dma.done [#allocation7], 16
        $region124: #{tpu_custom_call.1} parent=111 // pred_fallthru
          _
        // Predicated region
        $region125: #{tpu_custom_call.1} parent=111 // pred_check
          %p806 = pneg %p171
        $region126: #{tpu_custom_call.1} parent=111 // pred_check_branch
          %808 = sbr.rel (%p806) target = $region128
        $region127: #{tpu_custom_call.1} parent=111 // pred_region
          %810 = dma.done [#allocation10], 16
        $region128: #{tpu_custom_call.1} parent=111 // pred_fallthru
          _
        // Predicated region
        $region129: #{tpu_custom_call.1} parent=111 // pred_check
          %p811 = pneg %p192
        $region130: #{tpu_custom_call.1} parent=111 // pred_check_branch
          %813 = sbr.rel (%p811) target = $region132
        $region131: #{tpu_custom_call.1} parent=111 // pred_region
          %815 = dma.done [#allocation10], 16
        $region132: #{tpu_custom_call.1} parent=111 // pred_fallthru
          _
        // Predicated region
        $region133: #{tpu_custom_call.1} parent=111 // pred_check
          %p816 = pneg %p234
        $region134: #{tpu_custom_call.1} parent=111 // pred_check_branch
          %818 = sbr.rel (%p816) target = $region136
        $region135: #{tpu_custom_call.1} parent=111 // pred_region
          %820 = dma.done [#allocation13], 16
        $region136: #{tpu_custom_call.1} parent=111 // pred_fallthru
          _
        // Predicated region
        $region137: #{tpu_custom_call.1} parent=111 // pred_check
          %p821 = pneg %p276
        $region138: #{tpu_custom_call.1} parent=111 // pred_check_branch
          %823 = sbr.rel (%p821) target = $region140
        $region139: #{tpu_custom_call.1} parent=111 // pred_region
          %825 = dma.done [#allocation13], 16
        $region140: #{tpu_custom_call.1} parent=111 // pred_fallthru
          _
        // Predicated region
        $region141: #{tpu_custom_call.1} parent=111 // pred_check
          %p826 = pneg %p297
        $region142: #{tpu_custom_call.1} parent=111 // pred_check_branch
          %828 = sbr.rel (%p826) target = $region144
        $region143: #{tpu_custom_call.1} parent=111 // pred_region
          %830 = dma.done [#allocation16], 128
        $region144: #{tpu_custom_call.1} parent=111 // pred_fallthru
          _
        // Predicated region
        $region145: #{tpu_custom_call.1} parent=111 // pred_check
          %p831 = pneg %p318
        $region146: #{tpu_custom_call.1} parent=111 // pred_check_branch
          %833 = sbr.rel (%p831) target = $region148
        $region147: #{tpu_custom_call.1} parent=111 // pred_region
          %835 = dma.done [#allocation16], 16
        $region148: #{tpu_custom_call.1} parent=111 // pred_fallthru
          _
        // Predicated region
        $region149: #{tpu_custom_call.1} parent=111 // pred_check
          %p836 = pneg %p360
        $region150: #{tpu_custom_call.1} parent=111 // pred_check_branch
          %838 = sbr.rel (%p836) target = $region152
        $region151: #{tpu_custom_call.1} parent=111 // pred_region
          %840 = dma.done [#allocation19], 16
        $region152: #{tpu_custom_call.1} parent=111 // pred_fallthru
          _
        // Predicated region
        $region153: #{tpu_custom_call.1} parent=111 // pred_check
          %p841 = pneg %p402
        $region154: #{tpu_custom_call.1} parent=111 // pred_check_branch
          %843 = sbr.rel (%p841) target = $region156
        $region155: #{tpu_custom_call.1} parent=111 // pred_region
          %845 = dma.done [#allocation19], 16
        $region156: #{tpu_custom_call.1} parent=111 // pred_fallthru
          _
        // Predicated region
        $region157: #{tpu_custom_call.1} parent=111 // pred_check
          %p846 = pneg %p423
        $region158: #{tpu_custom_call.1} parent=111 // pred_check_branch
          %848 = sbr.rel (%p846) target = $region160
        $region159: #{tpu_custom_call.1} parent=111 // pred_region
          %850 = dma.done [#allocation22], 16
        $region160: #{tpu_custom_call.1} parent=111 // pred_fallthru
          _
        // Predicated region
        $region161: #{tpu_custom_call.1} parent=111 // pred_check
          %p851 = pneg %p444
        $region162: #{tpu_custom_call.1} parent=111 // pred_check_branch
          %853 = sbr.rel (%p851) target = $region164
        $region163: #{tpu_custom_call.1} parent=111 // pred_region
          %855 = dma.done [#allocation22], 16
        $region164: #{tpu_custom_call.1} parent=111 // pred_fallthru
          _
        // Predicated region
        $region165: #{tpu_custom_call.1} parent=111 // pred_check
          %p856 = pneg %p465
        $region166: #{tpu_custom_call.1} parent=111 // pred_check_branch
          %858 = sbr.rel (%p856) target = $region168
        $region167: #{tpu_custom_call.1} parent=111 // pred_region
          %860 = dma.done [#allocation25], 256
        $region168: #{tpu_custom_call.1} parent=111 // pred_fallthru
          _
        // Predicated region
        $region169: #{tpu_custom_call.1} parent=111 // pred_check
          %p861 = pneg %p486
        $region170: #{tpu_custom_call.1} parent=111 // pred_check_branch
          %863 = sbr.rel (%p861) target = $region172
        $region171: #{tpu_custom_call.1} parent=111 // pred_region
          %865 = dma.done [#allocation25], 16
        $region172: #{tpu_custom_call.1} parent=111 // pred_fallthru
          _
        %p866 = scmp.lt.s32.totalorder %s45, 1
        %s867 = scalar_select %p866, %s45, 1
        %s868 = smul.addr %s867, 2
        %s869 = smul.addr %s868, 4
        %s870 = scalar_lea.vmem %s0, %s869
        %p871 = pneg %p66
        %p872 = pneg %p63
        %p873 = pneg %p87
        %p874 = pneg %p84
        %p875 = pneg %p108
        %p876 = pneg %p105
        %p877 = pneg %p129
        %p878 = pneg %p126
        %p879 = pneg %p150
        %p880 = pneg %p147
        %p881 = pneg %p171
        %p882 = pneg %p168
        %p883 = pneg %p192
        %p884 = pneg %p189
        %p885 = pneg %p213
        %p886 = pneg %p210
        %p887 = pneg %p234
        %p888 = pneg %p231
        %p889 = pneg %p255
        %p890 = pneg %p252
        %p891 = pneg %p276
        %p892 = pneg %p273
        %p893 = pneg %p297
        %p894 = pneg %p294
        %p895 = pneg %p318
        %p896 = pneg %p315
        %p897 = pneg %p339
        %p898 = pneg %p336
        %p899 = pneg %p360
        %p900 = pneg %p357
        %p901 = pneg %p381
        %p902 = pneg %p378
        %p903 = pneg %p402
        %p904 = pneg %p399
        %p905 = pneg %p423
        %p906 = pneg %p420
        %p907 = pneg %p444
        %p908 = pneg %p441
        %p909 = pneg %p465
        %p910 = pneg %p462
        %p911 = pneg %p486
        %p912 = pneg %p483
        %p913 = pneg %p507
        %p914 = pneg %p504
        %p915 = pneg %p528
        %p916 = pneg %p525
        %p917 = pneg %p554
        %p918 = pneg %p551
        %s919 = sand.u32 %s541, 1
        %s920 = scalar_lea.sflag [#allocation5], %s919
        %s921 = sand.u32 %s541, 1
        %s922 = smul.addr %s921, 8
        %s923 = scalar_lea.vmem [#allocation27], %s922
        %p924 = scmp.lt.s32.totalorder %s45, 1
        %s925 = scalar_select %p924, %s45, 1
        %s926 = smul.addr %s925, 2
        %s927 = smul.addr %s926, 4
        %s928 = scalar_lea.vmem %s0, %s927
        %p930 = scmp.eq.s32.totalorder %s45, 0
        // Predicated region
        $region173: #{tpu_custom_call.1} parent=111 // pred_check
          %p931 = pneg %p930
        $region174: #{tpu_custom_call.1} parent=111 // pred_check_branch
          %933 = sbr.rel (%p931) target = $region176
        $region175: #{tpu_custom_call.1} parent=111 // pred_region
          %vm934 = vcmask 261120
          %935 = vst.msk [vmem:[#allocation2] sm:$0xff] %vm934, 0.0
          %936 = vst.msk [vmem:[#allocation2 + $0x18] sm:$0xff] %vm934, 0.0
        $region176: #{tpu_custom_call.1} parent=111 // pred_fallthru
          _
        %v937 = vld [vmem:[%s928] sm:$0xf]
        %v938 = vld [vmem:[%s928 + $0x4] sm:$0xf]
        %v939 = vld [vmem:[%s1] sm:$0xf]
        %v940 = vld [vmem:[%s1 + $0x4] sm:$0xf]
        %v941 = vld [vmem:[%s1 + $0x8] sm:$0xf]
        %v942 = vld [vmem:[%s1 + $0xc] sm:$0xf]
        %v943 = vld [vmem:[#allocation3] sm:$0x1]
        %v945 = vperm.slane %v943, 0
        %v949 = vunpack.c.l.b16 %v937
        %v950 = vunpack.c.l.b16 %v938
        %v951 = vpack.c.b16 %v950, %v949
        %v956 = vunpack.c.l.b16 %v939
        %v957 = vunpack.c.l.b16 %v940
        %v958 = vunpack.c.l.b16 %v941
        %v959 = vunpack.c.l.b16 %v942
        %v960 = vpack.c.b16 %v957, %v956
        %v961 = vpack.c.b16 %v959, %v958
        %vm964 = vcmask 261120
        %v966 = vsel %vm964, %v951, 0
        %968 = vmatpush.bf16.msra.mxu0 0
        %969 = vmatpush.bf16.msra.mxu0 0
        %970 = vmatpush.bf16.msra.mxu0 0
        %971 = vmatpush.bf16.msra.mxu0 0
        %972 = vmatpush.bf16.msra.mxu0 0
        %973 = vmatpush.bf16.msra.mxu0 0
        %974 = vmatpush.bf16.msra.mxu0 %v961
        %975 = vmatpush.bf16.msra.mxu0 %v960
        %976 = vmatmul.bf16.gmra.mxu0 %v966
        %v977 = vpop.f32.mrf.mxu0
        %v978 = vadd.f32 %v945, %v977
        %v979 = vpop.f32.mrf.mxu0
        %v980 = vadd.f32 %v945, %v979
        %981 = vdwg.mxu0
        %v982 = vld [vmem:[#allocation6] sm:$0x1]
        %v984 = vperm.slane %v982, 0
        %v986 = vmul.f32 %v984, %v978
        %v987 = vmul.f32 %v984, %v980
        %v988 = vand.u32 2147483647, %v986
        %vm989 = vcmp.le.f32.partialorder %v988, 0.7853982
        %vm990 = vcmp.lt.s32.totalorder %v986, 0
        %v991 = vand.u32 %v986, 2139095040
        %v992 = vshrl.u32 %v991, 23
        %v993 = vsub.s32 %v992, 127
        %v994 = vand.u32 2147483647, %v986
        %v995 = vand.u32 %v994, 8388607
        %v996 = vor.u32 %v995, 8388608
        %v997 = vsub.s32 0, %v996
        %v998 = vadd.s32 %v993, 1
        %vm999 = vcmp.gt.s32.totalorder %v998, 0
        %v1000 = vsel %vm999, %v998, 0
        %v1001 = vshrl.u32 %v1000, 5
        %v1002 = vand.u32 %v1000, 31
        %v1003 = vsub.s32 32, %v1002
        %v1004 = vshrl.u32 683565275, %v1003
        %v1005 = vshll.u32 683565275, %v1002
        %v1006 = vshrl.u32 2475754826, %v1003
        %v1007 = vor.u32 %v1005, %v1006
        %v1008 = vshll.u32 2475754826, %v1002
        %v1009 = vshrl.u32 2131351028, %v1003
        %v1010 = vor.u32 %v1008, %v1009
        %v1011 = vshll.u32 2131351028, %v1002
        %v1012 = vshrl.u32 2102212464, %v1003
        %v1013 = vor.u32 %v1011, %v1012
        %v1014 = vshll.u32 2102212464, %v1002
        %v1015 = vshrl.u32 920167782, %v1003
        %v1016 = vor.u32 %v1014, %v1015
        %v1017 = vshll.u32 920167782, %v1002
        %v1018 = vshrl.u32 1326507024, %v1003
        %v1019 = vor.u32 %v1017, %v1018
        %vm1020 = vcmp.lt.s32.totalorder %v1001, 1
        %vm1021 = vcmp.lt.s32.totalorder %v1001, 2
        %vm1022 = vcmp.lt.s32.totalorder %v1001, 3
        %vm1023 = vcmp.lt.s32.totalorder %v1001, 4
        %v1024 = vsel %vm1020, %v1004, %v1007
        %v1025 = vsel %vm1023, %v1013, 2102212464
        %v1026 = vsel %vm1022, %v1010, %v1025
        %v1027 = vsel %vm1021, %v1024, %v1026
        %v1028 = vsel %vm1020, %v1007, %v1010
        %v1029 = vsel %vm1023, %v1016, 920167782
        %v1030 = vsel %vm1022, %v1013, %v1029
        %v1031 = vsel %vm1021, %v1028, %v1030
        %v1032 = vsel %vm1020, %v1010, %v1013
        %v1033 = vsel %vm1023, %v1019, 1326507024
        %v1034 = vsel %vm1022, %v1016, %v1033
        %v1035 = vsel %vm1021, %v1032, %v1034
        %v1036 = vshll.u32 %v996, 8
        %v1037 = vand.u32 %v1036, 65535
        %v1038 = vshrl.u32 %v1036, 16
        %v1039 = vand.u32 %v1035, 65535
        %v1040 = vshrl.u32 %v1035, 16
        %v1041 = vmul.u32 %v1037, %v1039
        %v1042 = vmul.u32 %v1037, %v1040
        %v1043 = vmul.u32 %v1038, %v1039
        %v1044 = vmul.u32 %v1038, %v1040
        %v1045 = vshll.u32 %v1042, 16
        %v1046 = vshrl.u32 %v1042, 16
        %v1047 = vshll.u32 %v1043, 16
        %v1048 = vshrl.u32 %v1043, 16
        %vm1049 = vc.u32 %v1041, %v1045
        %v1050 = vsel %vm1049, 1, 0
        %v1051 = vadd.s32 %v1041, %v1045
        %v1052 = vadd.s32 %v1044, %v1050
        %vm1053 = vc.u32 %v1051, %v1047
        %v1054 = vsel %vm1053, 1, 0
        %v1055 = vadd.s32 %v1051, %v1047
        %v1056 = vadd.s32 %v1052, %v1054
        %v1057 = vadd.s32 %v1056, %v1046
        %v1058 = vadd.s32 %v1057, %v1048
        %v1059 = vand.u32 %v1036, 65535
        %v1060 = vshrl.u32 %v1036, 16
        %v1061 = vand.u32 %v1031, 65535
        %v1062 = vshrl.u32 %v1031, 16
        %v1063 = vmul.u32 %v1059, %v1061
        %v1064 = vmul.u32 %v1059, %v1062
        %v1065 = vmul.u32 %v1060, %v1061
        %v1066 = vmul.u32 %v1060, %v1062
        %v1067 = vshll.u32 %v1064, 16
        %v1068 = vshrl.u32 %v1064, 16
        %v1069 = vshll.u32 %v1065, 16
        %v1070 = vshrl.u32 %v1065, 16
        %vm1071 = vc.u32 %v1063, %v1067
        %v1072 = vsel %vm1071, 1, 0
        %v1073 = vadd.s32 %v1063, %v1067
        %v1074 = vadd.s32 %v1066, %v1072
        %vm1075 = vc.u32 %v1073, %v1069
        %v1076 = vsel %vm1075, 1, 0
        %v1077 = vadd.s32 %v1073, %v1069
        %v1078 = vadd.s32 %v1074, %v1076
        %v1079 = vadd.s32 %v1078, %v1068
        %v1080 = vadd.s32 %v1079, %v1070
        %v1081 = vmul.u32 %v1036, %v1027
        %v1082 = vadd.s32 %v1058, %v1077
        %vm1083 = vc.u32 %v1058, %v1077
        %v1084 = vadd.s32 %v1080, 1
        %v1085 = vsel %vm1083, %v1084, %v1080
        %v1086 = vadd.s32 %v1081, %v1085
        %v1087 = vadd.s32 %v1086, 536870912
        %v1088 = vshrl.u32 %v1087, 30
        %v1089 = vshll.u32 %v1088, 30
        %v1090 = vsub.s32 %v1086, %v1089
        %vm1091 = vcmp.lt.s32.totalorder %v1090, 0
        %v1092 = vsub.s32 0, %v1090
        %v1093 = vsel %vm1091, %v1092, %v1090
        %v1094 = vclz %v1093
        %v1095 = vsub.s32 %v1094, 2
        %vm1096 = vcmp.gt.s32.totalorder 0, %v1095
        %v1097 = vsel %vm1096, 0, %v1095
        %v1098 = vsub.s32 32, %v1097
        %v1099 = vshll.u32 %v1090, %v1097
        %v1100 = vshrl.u32 %v1082, %v1098
        %v1101 = vor.u32 %v1099, %v1100
        %v1102 = vsub.s32 4294967266, %v1097
        %v1103 = vadd.s32 %v1102, 127
        %v1104 = vshll.u32 %v1103, 23
        %v1105 = vor.u32 4788187, %v1104
        %v1106 = vand.u32 2147483647, %v1105
        %v1108 = vcvt.s32.f32 %v1101
        %v1109 = vmul.f32 %v1108, %v1106
        %v1110 = vxor.u32 %v1109, 2147483648
        %v1111 = vsel %vm990, %v1110, %v1109
        %v1112 = vsub.s32 4, %v1088
        %v1113 = vsel %vm990, %v1112, %v1088
        %v1114 = vsel %vm989, %v986, %v1111
        %v1115 = vsel %vm989, 0, %v1113
        %v1116 = vmul.f32 %v1114, %v1114
        %v1117 = vmul.f32 %v1116, -0.001358992
        %v1118 = vadd.f32 %v1117, 0.041655596
        %v1119 = vmul.f32 %v1116, %v1118
        %v1120 = vadd.f32 %v1119, -0.4999988
        %v1121 = vmul.f32 %v1116, %v1120
        %v1122 = vadd.f32 1.0, %v1121
        %v1123 = vmul.f32 %v1114, %v1114
        %v1124 = vmul.f32 %v1123, -0.00019511016
        %v1125 = vadd.f32 %v1124, 0.008332121
        %v1126 = vmul.f32 %v1123, %v1125
        %v1127 = vadd.f32 %v1126, -0.16666654
        %v1128 = vmul.f32 %v1123, %v1127
        %v1129 = vadd.f32 %v1128, 1.0
        %v1130 = vmul.f32 %v1129, %v1114
        %vm1131 = vweird.f32 %v986
        %v1132 = vadd.s32 %v1115, 3
        %v1133 = vand.u32 %v1132, 3
        %vm1134 = vcmp.lt.s32.totalorder %v1133, 2
        %vm1135 = vcmp.eq.s32.totalorder %v1133, 0
        %v1136 = vxor.u32 %v1130, 2147483648
        %v1137 = vsel %vm1135, %v1122, %v1136
        %vm1138 = vcmp.eq.s32.totalorder %v1133, 2
        %v1139 = vxor.u32 %v1122, 2147483648
        %v1140 = vsel %vm1138, %v1139, %v1130
        %v1141 = vsel %vm1134, %v1137, %v1140
        %v1142 = vsel %vm1131, nan, %v1141
        %v1143 = vand.u32 2147483647, %v987
        %vm1144 = vcmp.le.f32.partialorder %v1143, 0.7853982
        %vm1145 = vcmp.lt.s32.totalorder %v987, 0
        %v1146 = vand.u32 %v987, 2139095040
        %v1147 = vshrl.u32 %v1146, 23
        %v1148 = vsub.s32 %v1147, 127
        %v1149 = vand.u32 2147483647, %v987
        %v1150 = vand.u32 %v1149, 8388607
        %v1151 = vor.u32 %v1150, 8388608
        %v1152 = vsub.s32 0, %v1151
        %v1153 = vadd.s32 %v1148, 1
        %vm1154 = vcmp.gt.s32.totalorder %v1153, 0
        %v1155 = vsel %vm1154, %v1153, 0
        %v1156 = vshrl.u32 %v1155, 5
        %v1157 = vand.u32 %v1155, 31
        %v1158 = vsub.s32 32, %v1157
        %v1159 = vshrl.u32 683565275, %v1158
        %v1160 = vshll.u32 683565275, %v1157
        %v1161 = vshrl.u32 2475754826, %v1158
        %v1162 = vor.u32 %v1160, %v1161
        %v1163 = vshll.u32 2475754826, %v1157
        %v1164 = vshrl.u32 2131351028, %v1158
        %v1165 = vor.u32 %v1163, %v1164
        %v1166 = vshll.u32 2131351028, %v1157
        %v1167 = vshrl.u32 2102212464, %v1158
        %v1168 = vor.u32 %v1166, %v1167
        %v1169 = vshll.u32 2102212464, %v1157
        %v1170 = vshrl.u32 920167782, %v1158
        %v1171 = vor.u32 %v1169, %v1170
        %v1172 = vshll.u32 920167782, %v1157
        %v1173 = vshrl.u32 1326507024, %v1158
        %v1174 = vor.u32 %v1172, %v1173
        %vm1175 = vcmp.lt.s32.totalorder %v1156, 1
        %vm1176 = vcmp.lt.s32.totalorder %v1156, 2
        %vm1177 = vcmp.lt.s32.totalorder %v1156, 3
        %vm1178 = vcmp.lt.s32.totalorder %v1156, 4
        %v1179 = vsel %vm1175, %v1159, %v1162
        %v1180 = vsel %vm1178, %v1168, 2102212464
        %v1181 = vsel %vm1177, %v1165, %v1180
        %v1182 = vsel %vm1176, %v1179, %v1181
        %v1183 = vsel %vm1175, %v1162, %v1165
        %v1184 = vsel %vm1178, %v1171, 920167782
        %v1185 = vsel %vm1177, %v1168, %v1184
        %v1186 = vsel %vm1176, %v1183, %v1185
        %v1187 = vsel %vm1175, %v1165, %v1168
        %v1188 = vsel %vm1178, %v1174, 1326507024
        %v1189 = vsel %vm1177, %v1171, %v1188
        %v1190 = vsel %vm1176, %v1187, %v1189
        %v1191 = vshll.u32 %v1151, 8
        %v1192 = vand.u32 %v1191, 65535
        %v1193 = vshrl.u32 %v1191, 16
        %v1194 = vand.u32 %v1190, 65535
        %v1195 = vshrl.u32 %v1190, 16
        %v1196 = vmul.u32 %v1192, %v1194
        %v1197 = vmul.u32 %v1192, %v1195
        %v1198 = vmul.u32 %v1193, %v1194
        %v1199 = vmul.u32 %v1193, %v1195
        %v1200 = vshll.u32 %v1197, 16
        %v1201 = vshrl.u32 %v1197, 16
        %v1202 = vshll.u32 %v1198, 16
        %v1203 = vshrl.u32 %v1198, 16
        %vm1204 = vc.u32 %v1196, %v1200
        %v1205 = vsel %vm1204, 1, 0
        %v1206 = vadd.s32 %v1196, %v1200
        %v1207 = vadd.s32 %v1199, %v1205
        %vm1208 = vc.u32 %v1206, %v1202
        %v1209 = vsel %vm1208, 1, 0
        %v1210 = vadd.s32 %v1206, %v1202
        %v1211 = vadd.s32 %v1207, %v1209
        %v1212 = vadd.s32 %v1211, %v1201
        %v1213 = vadd.s32 %v1212, %v1203
        %v1214 = vand.u32 %v1191, 65535
        %v1215 = vshrl.u32 %v1191, 16
        %v1216 = vand.u32 %v1186, 65535
        %v1217 = vshrl.u32 %v1186, 16
        %v1218 = vmul.u32 %v1214, %v1216
        %v1219 = vmul.u32 %v1214, %v1217
        %v1220 = vmul.u32 %v1215, %v1216
        %v1221 = vmul.u32 %v1215, %v1217
        %v1222 = vshll.u32 %v1219, 16
        %v1223 = vshrl.u32 %v1219, 16
        %v1224 = vshll.u32 %v1220, 16
        %v1225 = vshrl.u32 %v1220, 16
        %vm1226 = vc.u32 %v1218, %v1222
        %v1227 = vsel %vm1226, 1, 0
        %v1228 = vadd.s32 %v1218, %v1222
        %v1229 = vadd.s32 %v1221, %v1227
        %vm1230 = vc.u32 %v1228, %v1224
        %v1231 = vsel %vm1230, 1, 0
        %v1232 = vadd.s32 %v1228, %v1224
        %v1233 = vadd.s32 %v1229, %v1231
        %v1234 = vadd.s32 %v1233, %v1223
        %v1235 = vadd.s32 %v1234, %v1225
        %v1236 = vmul.u32 %v1191, %v1182
        %v1237 = vadd.s32 %v1213, %v1232
        %vm1238 = vc.u32 %v1213, %v1232
        %v1239 = vadd.s32 %v1235, 1
        %v1240 = vsel %vm1238, %v1239, %v1235
        %v1241 = vadd.s32 %v1236, %v1240
        %v1242 = vadd.s32 %v1241, 536870912
        %v1243 = vshrl.u32 %v1242, 30
        %v1244 = vshll.u32 %v1243, 30
        %v1245 = vsub.s32 %v1241, %v1244
        %vm1246 = vcmp.lt.s32.totalorder %v1245, 0
        %v1247 = vsub.s32 0, %v1245
        %v1248 = vsel %vm1246, %v1247, %v1245
        %v1249 = vclz %v1248
        %v1250 = vsub.s32 %v1249, 2
        %vm1251 = vcmp.gt.s32.totalorder 0, %v1250
        %v1252 = vsel %vm1251, 0, %v1250
        %v1253 = vsub.s32 32, %v1252
        %v1254 = vshll.u32 %v1245, %v1252
        %v1255 = vshrl.u32 %v1237, %v1253
        %v1256 = vor.u32 %v1254, %v1255
        %v1257 = vsub.s32 4294967266, %v1252
        %v1258 = vadd.s32 %v1257, 127
        %v1259 = vshll.u32 %v1258, 23
        %v1260 = vor.u32 4788187, %v1259
        %v1261 = vand.u32 2147483647, %v1260
        %v1263 = vcvt.s32.f32 %v1256
        %v1264 = vmul.f32 %v1263, %v1261
        %v1265 = vxor.u32 %v1264, 2147483648
        %v1266 = vsel %vm1145, %v1265, %v1264
        %v1267 = vsub.s32 4, %v1243
        %v1268 = vsel %vm1145, %v1267, %v1243
        %v1269 = vsel %vm1144, %v987, %v1266
        %v1270 = vsel %vm1144, 0, %v1268
        %v1271 = vmul.f32 %v1269, %v1269
        %v1272 = vmul.f32 %v1271, -0.001358992
        %v1273 = vadd.f32 %v1272, 0.041655596
        %v1274 = vmul.f32 %v1271, %v1273
        %v1275 = vadd.f32 %v1274, -0.4999988
        %v1276 = vmul.f32 %v1271, %v1275
        %v1277 = vadd.f32 1.0, %v1276
        %v1278 = vmul.f32 %v1269, %v1269
        %v1279 = vmul.f32 %v1278, -0.00019511016
        %v1280 = vadd.f32 %v1279, 0.008332121
        %v1281 = vmul.f32 %v1278, %v1280
        %v1282 = vadd.f32 %v1281, -0.16666654
        %v1283 = vmul.f32 %v1278, %v1282
        %v1284 = vadd.f32 %v1283, 1.0
        %v1285 = vmul.f32 %v1284, %v1269
        %vm1286 = vweird.f32 %v987
        %v1287 = vadd.s32 %v1270, 3
        %v1288 = vand.u32 %v1287, 3
        %vm1289 = vcmp.lt.s32.totalorder %v1288, 2
        %vm1290 = vcmp.eq.s32.totalorder %v1288, 0
        %v1291 = vxor.u32 %v1285, 2147483648
        %v1292 = vsel %vm1290, %v1277, %v1291
        %vm1293 = vcmp.eq.s32.totalorder %v1288, 2
        %v1294 = vxor.u32 %v1277, 2147483648
        %v1295 = vsel %vm1293, %v1294, %v1285
        %v1296 = vsel %vm1289, %v1292, %v1295
        %v1297 = vsel %vm1286, nan, %v1296
        %v1298 = vld [vmem:[#allocation8] sm:$0x1]
        %v1299 = vmul.f32 %v1142, %v1142
        %v1300 = vmul.f32 %v1297, %v1297
        %v1302 = vperm.slane %v1298, 0
        %v1304 = vmul.f32 %v1302, %v1299
        %v1305 = vmul.f32 %v1302, %v1300
        %v1306 = vadd.f32 %v978, %v1304
        %v1307 = vadd.f32 %v980, %v1305
        %v1308 = vld [vmem:[#allocation9] sm:$0x1]
        %v1309 = vld [vmem:[#allocation11] sm:$0x1]
        %v1310 = vsel %vm964, %v1306, 0.0
        %1311 = vadd.xlane.f32.xlu0 %v1310
        %v1312 = vpop.xlane.xlu0 %1311
        %v1313 = vsel %vm964, %v1307, 0.0
        %1314 = vadd.xlane.f32.xlu0 %v1313
        %v1315 = vpop.xlane.xlu0 %1314
        %v1316 = vrcp.pop 32.0
        %v1317 = vmul.f32 32.0, %v1316
        %v1318 = vsub.f32 1.0, %v1317
        %v1319 = vmul.f32 %v1316, %v1318
        %v1320 = vadd.f32 %v1316, %v1319
        %vm1321 = vweird.f32 %v1316
        %v1322 = vsel %vm1321, %v1316, %v1320
        %v1323 = vmul.f32 %v1312, %v1322
        %v1324 = vmul.f32 %v1315, %v1322
        %v1325 = vsub.f32 %v1306, %v1323
        %v1326 = vsub.f32 %v1307, %v1324
        %v1327 = vmul.f32 %v1325, %v1325
        %v1328 = vmul.f32 %v1326, %v1326
        %v1329 = vsel %vm964, %v1327, 0.0
        %1330 = vadd.xlane.f32.xlu0 %v1329
        %v1331 = vpop.xlane.xlu0 %1330
        %v1332 = vsel %vm964, %v1328, 0.0
        %1333 = vadd.xlane.f32.xlu0 %v1332
        %v1334 = vpop.xlane.xlu0 %1333
        %v1335 = vmul.f32 %v1331, %v1322
        %v1336 = vmul.f32 %v1334, %v1322
        %v1337 = vadd.f32 %v1335, 1e-05
        %v1338 = vadd.f32 %v1336, 1e-05
        %v1339 = vrsqrt.pop %v1337
        %v1340 = vmul.f32 %v1339, %v1337
        %v1341 = vmul.f32 %v1340, %v1339
        %v1342 = vmul.f32 0.5, %v1341
        %v1343 = vsub.f32 1.5, %v1342
        %v1344 = vmul.f32 %v1339, %v1343
        %vm1345 = vweird.f32 %v1337
        %vm1346 = vweird.f32 %v1339
        %vm1347 = vmor %vm1345, %vm1346
        %v1348 = vsel %vm1347, %v1339, %v1344
        %v1349 = vrsqrt.pop %v1338
        %v1350 = vmul.f32 %v1349, %v1338
        %v1351 = vmul.f32 %v1350, %v1349
        %v1352 = vmul.f32 0.5, %v1351
        %v1353 = vsub.f32 1.5, %v1352
        %v1354 = vmul.f32 %v1349, %v1353
        %vm1355 = vweird.f32 %v1338
        %vm1356 = vweird.f32 %v1349
        %vm1357 = vmor %vm1355, %vm1356
        %v1358 = vsel %vm1357, %v1349, %v1354
        %v1359 = vmul.f32 %v1325, %v1348
        %v1360 = vmul.f32 %v1326, %v1358
        %v1362 = vperm.slane %v1308, 0
        %v1364 = vmul.f32 %v1359, %v1362
        %v1365 = vmul.f32 %v1360, %v1362
        %v1367 = vperm.slane %v1309, 0
        %v1369 = vadd.f32 %v1364, %v1367
        %v1370 = vadd.f32 %v1365, %v1367
        %v1371 = vpack.c.bf16 %v1370, %v1369
        %v1372 = vld [vmem:[%s7] sm:$0xf]
        %v1373 = vld [vmem:[%s7 + $0x4] sm:$0xf]
        %v1374 = vld [vmem:[%s7 + $0x8] sm:$0xf]
        %v1375 = vld [vmem:[%s7 + $0xc] sm:$0xf]
        %v1376 = vld [vmem:[#allocation12] sm:$0x1]
        %v1378 = vperm.slane %v1376, 0
        %v1384 = vunpack.c.l.b16 %v1372
        %v1385 = vunpack.c.l.b16 %v1373
        %v1386 = vunpack.c.l.b16 %v1374
        %v1387 = vunpack.c.l.b16 %v1375
        %v1388 = vpack.c.b16 %v1385, %v1384
        %v1389 = vpack.c.b16 %v1387, %v1386
        %v1393 = vsel %vm964, %v1371, 0
        %1395 = vmatpush.bf16.msra.mxu0 0
        %1396 = vmatpush.bf16.msra.mxu0 0
        %1397 = vmatpush.bf16.msra.mxu0 0
        %1398 = vmatpush.bf16.msra.mxu0 0
        %1399 = vmatpush.bf16.msra.mxu0 0
        %1400 = vmatpush.bf16.msra.mxu0 0
        %1401 = vmatpush.bf16.msra.mxu0 %v1389
        %1402 = vmatpush.bf16.msra.mxu0 %v1388
        %1403 = vmatmul.bf16.gmra.mxu0 %v1393
        %v1404 = vpop.f32.mrf.mxu0
        %v1405 = vadd.f32 %v1378, %v1404
        %v1406 = vpop.f32.mrf.mxu0
        %v1407 = vadd.f32 %v1378, %v1406
        %1408 = vdwg.mxu0
        %v1409 = vld [vmem:[%s9] sm:$0x7]
        %v1410 = vld [vmem:[#allocation14] sm:$0x1]
        %1413 = vrot.lane.b32.xlu0 %v1405, 96
        %v1414 = vpop.permute.xlu0 %1413
        %1415 = vrot.lane.b32.xlu0 %v1407, 96
        %v1416 = vpop.permute.xlu0 %1415
        %1419 = vst.msk [vmem:[#allocation2 + $0x8] sm:$0xff] %vm964, %v1414
        %1420 = vst.msk [vmem:[#allocation2 + $0x10] sm:$0xff] %vm964, %v1416
        %v1421 = vld [vmem:[#allocation2 + $0x7] sm:$0xff]
        %v1422 = vld [vmem:[#allocation2 + $0xf] sm:$0xff]
        %v1423 = vperm.slane %v1409, 0
        %v1424 = vmul.f32 %v1421, %v1423
        %v1425 = vmul.f32 %v1422, %v1423
        %v1426 = vadd.f32 %v1424, 0.0
        %v1427 = vadd.f32 %v1425, 0.0
        %v1428 = vld [vmem:[#allocation2 + $0x8] sm:$0xff]
        %v1429 = vld [vmem:[#allocation2 + $0x10] sm:$0xff]
        %v1430 = vperm.slane %v1409, 1
        %v1431 = vmul.f32 %v1428, %v1430
        %v1432 = vmul.f32 %v1429, %v1430
        %v1433 = vadd.f32 %v1426, %v1431
        %v1434 = vadd.f32 %v1427, %v1432
        %v1435 = vld [vmem:[#allocation2 + $0x9] sm:$0xff]
        %v1436 = vld [vmem:[#allocation2 + $0x11] sm:$0xff]
        %v1437 = vperm.slane %v1409, 2
        %v1438 = vmul.f32 %v1435, %v1437
        %v1439 = vmul.f32 %v1436, %v1437
        %v1440 = vadd.f32 %v1433, %v1438
        %v1441 = vadd.f32 %v1434, %v1439
        %v1443 = vperm.slane %v1410, 0
        %v1445 = vadd.f32 %v1440, %v1443
        %v1446 = vadd.f32 %v1441, %v1443
        %v1447 = vmul.f32 %v1445, 0.5
        %v1448 = vmul.f32 %v1446, 0.5
        %v1449 = vmul.f32 %v1445, 0.044715
        %v1450 = vmul.f32 %v1446, 0.044715
        %v1451 = vmul.f32 %v1449, %v1445
        %v1452 = vmul.f32 %v1450, %v1446
        %v1453 = vmul.f32 %v1451, %v1445
        %v1454 = vmul.f32 %v1452, %v1446
        %v1455 = vadd.f32 %v1445, %v1453
        %v1456 = vadd.f32 %v1446, %v1454
        %v1457 = vmul.f32 %v1455, 0.7978846
        %v1458 = vmul.f32 %v1456, 0.7978846
        %v1459 = vtanh.pop %v1457
        %v1460 = vtanh.pop %v1458
        %v1461 = vadd.f32 %v1459, 1.0
        %v1462 = vadd.f32 %v1460, 1.0
        %v1463 = vmul.f32 %v1447, %v1461
        %v1464 = vmul.f32 %v1448, %v1462
        %1465 = vset.pattern.permute.xlu0 64
        %1466 = vperm.xlu0 %1465, %v1405
        %v1467 = vpop.permute.xlu0 %1466
        %1469 = vset.pattern.permute.xlu0 64
        %1470 = vperm.xlu0 %1469, %v1407
        %v1471 = vpop.permute.xlu0 %1470
        %v1473 = vmul.f32 %v1463, %v1467
        %v1474 = vmul.f32 %v1464, %v1471
        %v1475 = vadd.f32 %v1473, 0.0
        %v1476 = vadd.f32 %v1474, 0.0
        %v1477 = vld [vmem:[#allocation15] sm:$0x1f]
        %v1478 = vld [vmem:[#allocation17] sm:$0x1]
        %1479 = vst.msk [vmem:[#allocation2 + $0x8] sm:$0xff] %vm964, %v1463
        %1480 = vst.msk [vmem:[#allocation2 + $0x10] sm:$0xff] %vm964, %v1464
        %v1481 = vld [vmem:[#allocation2 + $0x6] sm:$0xff]
        %v1482 = vld [vmem:[#allocation2 + $0xe] sm:$0xff]
        %v1483 = vperm.slane %v1477, 0
        %v1484 = vmul.f32 %v1481, %v1483
        %v1485 = vmul.f32 %v1482, %v1483
        %v1486 = vadd.f32 %v1484, 0.0
        %v1487 = vadd.f32 %v1485, 0.0
        %v1488 = vld [vmem:[#allocation2 + $0x7] sm:$0xff]
        %v1489 = vld [vmem:[#allocation2 + $0xf] sm:$0xff]
        %v1490 = vperm.slane %v1477, 1
        %v1491 = vmul.f32 %v1488, %v1490
        %v1492 = vmul.f32 %v1489, %v1490
        %v1493 = vadd.f32 %v1486, %v1491
        %v1494 = vadd.f32 %v1487, %v1492
        %v1495 = vld [vmem:[#allocation2 + $0x8] sm:$0xff]
        %v1496 = vld [vmem:[#allocation2 + $0x10] sm:$0xff]
        %v1497 = vperm.slane %v1477, 2
        %v1498 = vmul.f32 %v1495, %v1497
        %v1499 = vmul.f32 %v1496, %v1497
        %v1500 = vadd.f32 %v1493, %v1498
        %v1501 = vadd.f32 %v1494, %v1499
        %v1502 = vld [vmem:[#allocation2 + $0x9] sm:$0xff]
        %v1503 = vld [vmem:[#allocation2 + $0x11] sm:$0xff]
        %v1504 = vperm.slane %v1477, 3
        %v1505 = vmul.f32 %v1502, %v1504
        %v1506 = vmul.f32 %v1503, %v1504
        %v1507 = vadd.f32 %v1500, %v1505
        %v1508 = vadd.f32 %v1501, %v1506
        %v1509 = vld [vmem:[#allocation2 + $0xa] sm:$0xff]
        %v1510 = vld [vmem:[#allocation2 + $0x12] sm:$0xff]
        %v1511 = vperm.slane %v1477, 4
        %v1512 = vmul.f32 %v1509, %v1511
        %v1513 = vmul.f32 %v1510, %v1511
        %v1514 = vadd.f32 %v1507, %v1512
        %v1515 = vadd.f32 %v1508, %v1513
        %v1517 = vperm.slane %v1478, 0
        %v1519 = vadd.f32 %v1514, %v1517
        %v1520 = vadd.f32 %v1515, %v1517
        %v1521 = vmul.f32 %v1519, 0.5
        %v1522 = vmul.f32 %v1520, 0.5
        %v1523 = vmul.f32 %v1519, 0.044715
        %v1524 = vmul.f32 %v1520, 0.044715
        %v1525 = vmul.f32 %v1523, %v1519
        %v1526 = vmul.f32 %v1524, %v1520
        %v1527 = vmul.f32 %v1525, %v1519
        %v1528 = vmul.f32 %v1526, %v1520
        %v1529 = vadd.f32 %v1519, %v1527
        %v1530 = vadd.f32 %v1520, %v1528
        %v1531 = vmul.f32 %v1529, 0.7978846
        %v1532 = vmul.f32 %v1530, 0.7978846
        %v1533 = vtanh.pop %v1531
        %v1534 = vtanh.pop %v1532
        %v1535 = vadd.f32 %v1533, 1.0
        %v1536 = vadd.f32 %v1534, 1.0
        %v1537 = vmul.f32 %v1521, %v1535
        %v1538 = vmul.f32 %v1522, %v1536
        %1539 = vset.pattern.permute.xlu0 65
        %1540 = vperm.xlu0 %1539, %v1405
        %v1541 = vpop.permute.xlu0 %1540
        %1543 = vset.pattern.permute.xlu0 65
        %1544 = vperm.xlu0 %1543, %v1407
        %v1545 = vpop.permute.xlu0 %1544
        %v1547 = vmul.f32 %v1537, %v1541
        %v1548 = vmul.f32 %v1538, %v1545
        %v1549 = vadd.f32 %v1475, %v1547
        %v1550 = vadd.f32 %v1476, %v1548
        %v1551 = vsel %vm964, %v1537, 0.0
        %v1552 = vsel %vm964, %v1538, 0.0
        %v1553 = vadd.f32 %v1551, %v1552
        %v1554 = vrot.slane %v1553, 4
        %v1555 = vadd.f32 %v1553, %v1554
        %v1556 = vrot.slane %v1555, 2
        %v1557 = vadd.f32 %v1555, %v1556
        %v1558 = vrot.slane %v1557, 1
        %v1559 = vadd.f32 %v1557, %v1558
        %v1560 = vrcp.pop 16.0
        %v1561 = vmul.f32 16.0, %v1560
        %v1562 = vsub.f32 1.0, %v1561
        %v1563 = vmul.f32 %v1560, %v1562
        %v1564 = vadd.f32 %v1560, %v1563
        %vm1565 = vweird.f32 %v1560
        %v1566 = vsel %vm1565, %v1560, %v1564
        %v1567 = vmul.f32 %v1559, %v1566
        %v1568 = vmul.f32 %v1567, 0.5
        %v1569 = vmul.f32 %v1567, 0.044715
        %v1570 = vmul.f32 %v1569, %v1567
        %v1571 = vmul.f32 %v1570, %v1567
        %v1572 = vadd.f32 %v1567, %v1571
        %v1573 = vmul.f32 %v1572, 0.7978846
        %v1574 = vtanh.pop %v1573
        %v1575 = vadd.f32 %v1574, 1.0
        %v1576 = vmul.f32 %v1568, %v1575
        %1577 = vset.pattern.permute.xlu0 66
        %1578 = vperm.xlu0 %1577, %v1405
        %v1579 = vpop.permute.xlu0 %1578
        %1581 = vset.pattern.permute.xlu0 66
        %1582 = vperm.xlu0 %1581, %v1407
        %v1583 = vpop.permute.xlu0 %1582
        %v1585 = vmul.f32 %v1576, %v1579
        %v1586 = vmul.f32 %v1576, %v1583
        %v1587 = vadd.f32 %v1549, %v1585
        %v1588 = vadd.f32 %v1550, %v1586
        %v1589 = vpack.c.bf16 %v1588, %v1587
        %v1590 = vld [vmem:[%s13] sm:$0xf]
        %v1591 = vld [vmem:[%s13 + $0x4] sm:$0xf]
        %v1592 = vld [vmem:[%s13 + $0x8] sm:$0xf]
        %v1593 = vld [vmem:[%s13 + $0xc] sm:$0xf]
        %v1594 = vld [vmem:[#allocation18] sm:$0x1]
        %v1596 = vperm.slane %v1594, 0
        %v1602 = vunpack.c.l.b16 %v1590
        %v1603 = vunpack.c.l.b16 %v1591
        %v1604 = vunpack.c.l.b16 %v1592
        %v1605 = vunpack.c.l.b16 %v1593
        %v1606 = vpack.c.b16 %v1603, %v1602
        %v1607 = vpack.c.b16 %v1605, %v1604
        %v1611 = vsel %vm964, %v1589, 0
        %1613 = vmatpush.bf16.msra.mxu0 0
        %1614 = vmatpush.bf16.msra.mxu0 0
        %1615 = vmatpush.bf16.msra.mxu0 0
        %1616 = vmatpush.bf16.msra.mxu0 0
        %1617 = vmatpush.bf16.msra.mxu0 0
        %1618 = vmatpush.bf16.msra.mxu0 0
        %1619 = vmatpush.bf16.msra.mxu0 %v1607
        %1620 = vmatpush.bf16.msra.mxu0 %v1606
        %1621 = vmatmul.bf16.gmra.mxu0 %v1611
        %v1622 = vpop.f32.mrf.mxu0
        %v1623 = vadd.f32 %v1596, %v1622
        %v1624 = vpop.f32.mrf.mxu0
        %v1625 = vadd.f32 %v1596, %v1624
        %1626 = vdwg.mxu0
        %v1627 = vmul.f32 %v1405, %v1623
        %v1628 = vmul.f32 %v1407, %v1625
        %v1629 = vpack.c.bf16 %v1628, %v1627
        %v1630 = vld [vmem:[%s15] sm:$0xf]
        %v1631 = vld [vmem:[%s15 + $0x4] sm:$0xf]
        %v1632 = vld [vmem:[%s15 + $0x8] sm:$0xf]
        %v1633 = vld [vmem:[%s15 + $0xc] sm:$0xf]
        %v1634 = vld [vmem:[#allocation20] sm:$0x1]
        %v1636 = vperm.slane %v1634, 0
        %v1642 = vunpack.c.l.b16 %v1630
        %v1643 = vunpack.c.l.b16 %v1631
        %v1644 = vunpack.c.l.b16 %v1632
        %v1645 = vunpack.c.l.b16 %v1633
        %v1646 = vpack.c.b16 %v1643, %v1642
        %v1647 = vpack.c.b16 %v1645, %v1644
        %v1651 = vsel %vm964, %v1629, 0
        %1653 = vmatpush.bf16.msra.mxu0 0
        %1654 = vmatpush.bf16.msra.mxu0 0
        %1655 = vmatpush.bf16.msra.mxu0 0
        %1656 = vmatpush.bf16.msra.mxu0 0
        %1657 = vmatpush.bf16.msra.mxu0 0
        %1658 = vmatpush.bf16.msra.mxu0 0
        %1659 = vmatpush.bf16.msra.mxu0 %v1647
        %1660 = vmatpush.bf16.msra.mxu0 %v1646
        %1661 = vmatmul.bf16.gmra.mxu0 %v1651
        %v1662 = vpop.f32.mrf.mxu0
        %v1663 = vadd.f32 %v1636, %v1662
        %v1664 = vpop.f32.mrf.mxu0
        %v1665 = vadd.f32 %v1636, %v1664
        %1666 = vdwg.mxu0
        %v1667 = vadd.f32 %v1306, %v1663
        %v1668 = vadd.f32 %v1307, %v1665
        %v1669 = vld [vmem:[#allocation21] sm:$0x1]
        %v1670 = vld [vmem:[#allocation23] sm:$0x1]
        %v1671 = vsel %vm964, %v1667, 0.0
        %1672 = vadd.xlane.f32.xlu0 %v1671
        %v1673 = vpop.xlane.xlu0 %1672
        %v1674 = vsel %vm964, %v1668, 0.0
        %1675 = vadd.xlane.f32.xlu0 %v1674
        %v1676 = vpop.xlane.xlu0 %1675
        %v1677 = vmul.f32 %v1673, %v1322
        %v1678 = vmul.f32 %v1676, %v1322
        %v1679 = vsub.f32 %v1667, %v1677
        %v1680 = vsub.f32 %v1668, %v1678
        %v1681 = vmul.f32 %v1679, %v1679
        %v1682 = vmul.f32 %v1680, %v1680
        %v1683 = vsel %vm964, %v1681, 0.0
        %1684 = vadd.xlane.f32.xlu0 %v1683
        %v1685 = vpop.xlane.xlu0 %1684
        %v1686 = vsel %vm964, %v1682, 0.0
        %1687 = vadd.xlane.f32.xlu0 %v1686
        %v1688 = vpop.xlane.xlu0 %1687
        %v1689 = vmul.f32 %v1685, %v1322
        %v1690 = vmul.f32 %v1688, %v1322
        %v1691 = vadd.f32 %v1689, 1e-05
        %v1692 = vadd.f32 %v1690, 1e-05
        %v1693 = vrsqrt.pop %v1691
        %v1694 = vmul.f32 %v1693, %v1691
        %v1695 = vmul.f32 %v1694, %v1693
        %v1696 = vmul.f32 0.5, %v1695
        %v1697 = vsub.f32 1.5, %v1696
        %v1698 = vmul.f32 %v1693, %v1697
        %vm1699 = vweird.f32 %v1691
        %vm1700 = vweird.f32 %v1693
        %vm1701 = vmor %vm1699, %vm1700
        %v1702 = vsel %vm1701, %v1693, %v1698
        %v1703 = vrsqrt.pop %v1692
        %v1704 = vmul.f32 %v1703, %v1692
        %v1705 = vmul.f32 %v1704, %v1703
        %v1706 = vmul.f32 0.5, %v1705
        %v1707 = vsub.f32 1.5, %v1706
        %v1708 = vmul.f32 %v1703, %v1707
        %vm1709 = vweird.f32 %v1692
        %vm1710 = vweird.f32 %v1703
        %vm1711 = vmor %vm1709, %vm1710
        %v1712 = vsel %vm1711, %v1703, %v1708
        %v1713 = vmul.f32 %v1679, %v1702
        %v1714 = vmul.f32 %v1680, %v1712
        %v1716 = vperm.slane %v1669, 0
        %v1718 = vmul.f32 %v1713, %v1716
        %v1719 = vmul.f32 %v1714, %v1716
        %v1721 = vperm.slane %v1670, 0
        %v1723 = vadd.f32 %v1718, %v1721
        %v1724 = vadd.f32 %v1719, %v1721
        %v1725 = vpack.c.bf16 %v1724, %v1723
        %v1726 = vld [vmem:[#allocation24] sm:$0xf]
        %v1727 = vld [vmem:[#allocation24 + $0x4] sm:$0xf]
        %v1728 = vld [vmem:[#allocation24 + $0x8] sm:$0xf]
        %v1729 = vld [vmem:[#allocation24 + $0xc] sm:$0xf]
        %v1730 = vld [vmem:[#allocation26] sm:$0x1]
        %v1732 = vperm.slane %v1730, 0
        %v1738 = vunpack.c.l.b16 %v1726
        %v1739 = vunpack.c.l.b16 %v1727
        %v1740 = vunpack.c.l.b16 %v1728
        %v1741 = vunpack.c.l.b16 %v1729
        %v1742 = vpack.c.b16 %v1739, %v1738
        %v1743 = vpack.c.b16 %v1741, %v1740
        %v1747 = vsel %vm964, %v1725, 0
        %1749 = vmatpush.bf16.msra.mxu0 0
        %1750 = vmatpush.bf16.msra.mxu0 0
        %1751 = vmatpush.bf16.msra.mxu0 0
        %1752 = vmatpush.bf16.msra.mxu0 0
        %1753 = vmatpush.bf16.msra.mxu0 0
        %1754 = vmatpush.bf16.msra.mxu0 0
        %1755 = vmatpush.bf16.msra.mxu0 %v1743
        %1756 = vmatpush.bf16.msra.mxu0 %v1742
        %1757 = vmatmul.bf16.gmra.mxu0 %v1747
        %v1758 = vpop.f32.mrf.mxu0
        %v1759 = vadd.f32 %v1732, %v1758
        %v1760 = vpop.f32.mrf.mxu0
        %v1761 = vadd.f32 %v1732, %v1760
        %1762 = vdwg.mxu0
        %v1763 = vmul.f32 %v1759, 0.5
        %v1764 = vmul.f32 %v1761, 0.5
        %v1765 = vmul.f32 %v1759, 0.044715
        %v1766 = vmul.f32 %v1761, 0.044715
        %v1767 = vmul.f32 %v1765, %v1759
        %v1768 = vmul.f32 %v1766, %v1761
        %v1769 = vmul.f32 %v1767, %v1759
        %v1770 = vmul.f32 %v1768, %v1761
        %v1771 = vadd.f32 %v1759, %v1769
        %v1772 = vadd.f32 %v1761, %v1770
        %v1773 = vmul.f32 %v1771, 0.7978846
        %v1774 = vmul.f32 %v1772, 0.7978846
        %v1775 = vtanh.pop %v1773
        %v1776 = vtanh.pop %v1774
        %v1777 = vadd.f32 %v1775, 1.0
        %v1778 = vadd.f32 %v1776, 1.0
        %v1779 = vmul.f32 %v1763, %v1777
        %v1780 = vmul.f32 %v1764, %v1778
        %v1781 = vpack.c.bf16 %v1780, %v1779
        %v1782 = vld [vmem:[%s21] sm:$0xf]
        %v1783 = vld [vmem:[%s21 + $0x4] sm:$0xf]
        %v1784 = vld [vmem:[%s21 + $0x8] sm:$0xf]
        %v1785 = vld [vmem:[%s21 + $0xc] sm:$0xf]
        %v1786 = vld [vmem:[%s21 + $0x10] sm:$0xf]
        %v1787 = vld [vmem:[%s21 + $0x14] sm:$0xf]
        %v1788 = vld [vmem:[%s21 + $0x18] sm:$0xf]
        %v1789 = vld [vmem:[%s21 + $0x1c] sm:$0xf]
        %v1790 = vld [vmem:[%s21 + $0x20] sm:$0xf]
        %v1791 = vld [vmem:[%s21 + $0x24] sm:$0xf]
        %v1792 = vld [vmem:[%s21 + $0x28] sm:$0xf]
        %v1793 = vld [vmem:[%s21 + $0x2c] sm:$0xf]
        %v1794 = vld [vmem:[%s21 + $0x30] sm:$0xf]
        %v1795 = vld [vmem:[%s21 + $0x34] sm:$0xf]
        %v1796 = vld [vmem:[%s21 + $0x38] sm:$0xf]
        %v1797 = vld [vmem:[%s21 + $0x3c] sm:$0xf]
        %v1798 = vld [vmem:[%s22] sm:$0x1]
        %v1800 = vperm.slane %v1798, 0
        %v1818 = vunpack.c.l.b16 %v1782
        %v1819 = vunpack.c.l.b16 %v1783
        %v1820 = vunpack.c.l.b16 %v1784
        %v1821 = vunpack.c.l.b16 %v1785
        %v1822 = vunpack.c.l.b16 %v1786
        %v1823 = vunpack.c.l.b16 %v1787
        %v1824 = vunpack.c.l.b16 %v1788
        %v1825 = vunpack.c.l.b16 %v1789
        %v1826 = vunpack.c.l.b16 %v1790
        %v1827 = vunpack.c.l.b16 %v1791
        %v1828 = vunpack.c.l.b16 %v1792
        %v1829 = vunpack.c.l.b16 %v1793
        %v1830 = vunpack.c.l.b16 %v1794
        %v1831 = vunpack.c.l.b16 %v1795
        %v1832 = vunpack.c.l.b16 %v1796
        %v1833 = vunpack.c.l.b16 %v1797
        %v1834 = vpack.c.b16 %v1819, %v1818
        %v1835 = vpack.c.b16 %v1821, %v1820
        %v1836 = vpack.c.b16 %v1823, %v1822
        %v1837 = vpack.c.b16 %v1825, %v1824
        %v1838 = vpack.c.b16 %v1827, %v1826
        %v1839 = vpack.c.b16 %v1829, %v1828
        %v1840 = vpack.c.b16 %v1831, %v1830
        %v1841 = vpack.c.b16 %v1833, %v1832
        %1850 = vmatpush.bf16.msra.mxu0 %v1841
        %1851 = vmatpush.bf16.msra.mxu0 %v1840
        %1852 = vmatpush.bf16.msra.mxu0 %v1839
        %1853 = vmatpush.bf16.msra.mxu0 %v1838
        %1854 = vmatpush.bf16.msra.mxu0 %v1837
        %1855 = vmatpush.bf16.msra.mxu0 %v1836
        %1856 = vmatpush.bf16.msra.mxu0 %v1835
        %1857 = vmatpush.bf16.msra.mxu0 %v1834
        %1858 = vmatmul.bf16.gmra.mxu0 %v1781
        %v1859 = vpop.f32.mrf.mxu0
        %v1860 = vadd.f32 %v1800, %v1859
        %v1861 = vpop.f32.mrf.mxu0
        %v1862 = vadd.f32 %v1800, %v1861
        %1863 = vdwg.mxu0
        %v1864 = vadd.f32 %v1667, %v1860
        %v1865 = vadd.f32 %v1668, %v1862
        %v1866 = vpack.c.bf16 %v1864, %v1864
        %v1867 = vpack.c.bf16 %v1865, %v1865
        %vm1868 = vcmask 257024
        %1869 = vst.msk [vmem:[%s923] sm:$0xf] %vm1868, %v1866
        %1870 = vst.msk [vmem:[%s923 + $0x4] sm:$0xf] %vm1868, %v1867
        %s1871 = sand.u32 %s541, 1
        %s1872 = scalar_lea.sflag [#allocation5], %s1871
        %s1873 = sand.u32 %s541, 1
        %s1874 = smul.addr %s1873, 8
        %s1875 = scalar_lea.vmem [#allocation27], %s1874
        // Predicated region
        $region177: #{tpu_custom_call.1} parent=111 // pred_check
          %p1876 = pneg %p551
        $region178: #{tpu_custom_call.1} parent=111 // pred_check_branch
          %1878 = sbr.rel (%p1876) target = $region180
        $region179: #{tpu_custom_call.1} parent=111 // pred_region
          %1880 = vsyncadd %s1872, 0
          %s1881 = smul.addr %s45, 2
          %s1882 = smul.addr %s1881, 4
          %s1883 = scalar_lea.hbm %s23, %s1882
          %s1884 = sshll.u32 %s1875, 4
          %s1885 = int_to_ptr.vmem [resolvable:$true] %s1884
          %s1886 = sshll.u32 %s1883, 4
          %s1887 = int_to_ptr.hbm [resolvable:$true] %s1886
          %1892 = dma.vmem_to_hbm [thread:$0]  %s1885, 128, %s1887, %s1872, 64, 64, 4
        $region180: #{tpu_custom_call.1} parent=111 // pred_fallthru
          _
      $region112: #{tpu_custom_call.1} parent=5 // pred_fallthru
        _
      %p1893 = scmp.le.s32.totalorder 2, %s40
      // Predicated region
      $region181: #{tpu_custom_call.1} parent=5 // pred_check
        %p1894 = pneg %p1893
      $region182: #{tpu_custom_call.1} parent=5 // pred_check_branch
        %1896 = sbr.rel (%p1894) target = $region184
      $region183: #{tpu_custom_call.1} parent=5 // pred_region
        %s1897 = ssub.s32 %s40, 2
        // Predicated region
        $region185: #{tpu_custom_call.1} parent=183 // pred_check
          %p1898 = pneg %p557
        $region186: #{tpu_custom_call.1} parent=183 // pred_check_branch
          %1900 = sbr.rel (%p1898) target = $region188
        $region187: #{tpu_custom_call.1} parent=183 // pred_region
          %s1901 = sand.u32 %s542, 1
          %s1902 = scalar_lea.sflag [#allocation5], %s1901
          %s1903 = sand.u32 %s542, 1
          %s1904 = smul.addr %s1903, 8
          %s1905 = scalar_lea.vmem [#allocation27], %s1904
          %1907 = dma.done %s1902, 128
        $region188: #{tpu_custom_call.1} parent=183 // pred_fallthru
          _
      $region184: #{tpu_custom_call.1} parent=5 // pred_fallthru
        _
    $region6: #{tpu_custom_call.1} parent=1 // loop_footer
      %s44 = sadd.s32 1, %s40
    $region7: #{tpu_custom_call.1} parent=1 // loop_footer_branch
      %39 = sbr.rel target = $region3
    $region8: #{tpu_custom_call.1} parent=1 // loop_exit
      _
    %1908 = vsyncpa [#allocation4], 1
    %s1909 = scalar_lea.sflag [#allocation4], 1
    %1910 = vsyncpa %s1909, 1
    %1911 = vsyncpa [#allocation7], 1
    %1912 = vsyncpa [#allocation10], 1
    %1913 = vsyncpa [#allocation13], 1
    %1914 = vsyncpa [#allocation16], 1
    %1915 = vsyncpa [#allocation19], 1
    %1916 = vsyncpa [#allocation22], 1
    %1917 = vsyncpa [#allocation25], 1
    %1918 = vsyncpa [#allocation5], 1
    %s1919 = scalar_lea.sflag [#allocation5], 1
    %1920 = vsyncpa %s1919, 1

</llo_original>
